<compile_context>
chip_gen: v7x
topology: tpu7x:2x2x1
jax: 0.10.0
libtpu: 0.0.40
codegen_flags: <defaults>
</compile_context>

<pallas_src>
import jax
import jax.numpy as jnp
from jax.experimental import pallas as pl
from jax.experimental.pallas import tpu as pltpu

EPS = 1e-5


def _bn_kernel(x_ref, gamma_ref, beta_ref, o_ref):
    # x_ref: (N, Cb, L) ; gamma_ref / beta_ref: (1, Cb, 1)
    x = x_ref[...]
    n, _, l = x.shape
    inv_count = 1.0 / float(n * l)

    # Single-pass statistics: lane (XLU) reduction first, then fold batch axis.
    s1 = jnp.sum(x, axis=2, keepdims=True)        # (N, Cb, 1)
    s2 = jnp.sum(x * x, axis=2, keepdims=True)    # (N, Cb, 1)
    s1 = jnp.sum(s1, axis=0, keepdims=True)       # (1, Cb, 1)
    s2 = jnp.sum(s2, axis=0, keepdims=True)       # (1, Cb, 1)

    mean = s1 * inv_count
    var = jnp.maximum(s2 * inv_count - mean * mean, 0.0)   # biased variance
    inv = jax.lax.rsqrt(var + EPS)                          # EUP, cheap

    # Precomputed per-channel affine -> 2 VPU ops per element.
    a = gamma_ref[...] * inv                       # (1, Cb, 1)
    b = beta_ref[...] - mean * a                   # (1, Cb, 1)
    o_ref[...] = (x * a + b).astype(o_ref.dtype)


def _pick_channel_block(C, per_channel_bytes, budget_bytes=16 << 20):
    """Largest divisor of C (sublane aligned) whose in+out, double-buffered
    footprint fits a conservative VMEM budget.  For (1, 576, 7, 7) this is C
    itself -> a single grid step."""
    for ndiv in range(1, C + 1):
        if C % ndiv:
            continue
        c_blk = C // ndiv
        if c_blk != C and c_blk % 8 != 0:
            continue
        if 4 * c_blk * per_channel_bytes <= budget_bytes:
            return c_blk
    return C  # tiny C: just take the whole thing


def batchnorm2d(x_nchw, gamma, beta):
    """BatchNorm2d forward with batch statistics (training-mode forward).

    x_nchw: [N, C, H, W] float32
    gamma, beta: [C] float32
    """
    N, C, H, W = x_nchw.shape
    L = H * W

    # Free reshapes only -- no HBM transpose passes.
    x3 = x_nchw.reshape(N, C, L)
    g3 = gamma.reshape(1, C, 1).astype(jnp.float32)
    b3 = beta.reshape(1, C, 1).astype(jnp.float32)

    c_blk = _pick_channel_block(C, N * L * 4)
    grid = (C // c_blk,)

    out3 = pl.pallas_call(
        _bn_kernel,
        out_shape=jax.ShapeDtypeStruct((N, C, L), jnp.float32),
        grid=grid,
        in_specs=[
            pl.BlockSpec((N, c_blk, L), lambda c: (0, c, 0)),
            pl.BlockSpec((1, c_blk, 1), lambda c: (0, c, 0)),
            pl.BlockSpec((1, c_blk, 1), lambda c: (0, c, 0)),
        ],
        out_specs=pl.BlockSpec((N, c_blk, L), lambda c: (0, c, 0)),
        compiler_params=pltpu.CompilerParams(
            dimension_semantics=("parallel",)),
    )(x3, g3, b3)

    return out3.reshape(N, C, H, W)


def _reference(x_nchw, gamma, beta):
    mean = jnp.mean(x_nchw, axis=(0, 2, 3), keepdims=True)
    var = jnp.mean((x_nchw - mean) ** 2, axis=(0, 2, 3), keepdims=True)
    return (x_nchw - mean) / jnp.sqrt(var + EPS) * gamma.reshape(1, -1, 1, 1) \
        + beta.reshape(1, -1, 1, 1)


if __name__ == "__main__":
    key = jax.random.PRNGKey(0)
    kx, kg, kb = jax.random.split(key, 3)

    N, C, H, W = 1, 576, 7, 7                     # shapes implied by the module
    x = jax.random.normal(kx, (N, C, H, W), dtype=jnp.float32)
    # deterministic synthetic parameters (PyTorch default would be ones/zeros)
    gamma = 1.0 + 0.1 * jax.random.normal(kg, (C,), dtype=jnp.float32)
    beta = 0.1 * jax.random.normal(kb, (C,), dtype=jnp.float32)

    out = batchnorm2d(x, gamma, beta)
    out = jax.block_until_ready(out)

    ref = _reference(x, gamma, beta)
    assert out.shape == (N, C, H, W)
    assert jnp.allclose(out, ref, atol=1e-4, rtol=1e-4), "mismatch vs reference"

    print("KERNEL_OK")
</pallas_src>

<mosaic_0001>
module attributes {stable_mosaic.version = 11 : i64} {
  func.func @_bn_kernel(%arg0: i32, %arg1: memref<1x576x49xf32, #tpu.memory_space<vmem>>, %arg2: memref<1x576x1xf32, #tpu.memory_space<vmem>>, %arg3: memref<1x576x1xf32, #tpu.memory_space<vmem>>, %arg4: memref<1x576x49xf32, #tpu.memory_space<vmem>>) attributes {dimension_semantics = [#tpu.dimension_semantics<parallel>], iteration_bounds = array<i64: 1>, scalar_prefetch = 0 : i64, scratch_operands = 0 : i64, tpu.core_type = #tpu.core_type<tc>, window_params = [{transform_indices = @transform_0, window_bounds = array<i64: 1, 576, 49>}, {transform_indices = @transform_1, window_bounds = array<i64: 1, 576, 1>}, {transform_indices = @transform_2, window_bounds = array<i64: 1, 576, 1>}, {transform_indices = @transform_3, window_bounds = array<i64: 1, 576, 49>}]} {
    %c0 = arith.constant 0 : index
    %c0_0 = arith.constant 0 : index
    %c0_1 = arith.constant 0 : index
    %0 = vector.load %arg1[%c0, %c0_0, %c0_1] : memref<1x576x49xf32, #tpu.memory_space<vmem>>, vector<1x576x49xf32>
    %cst = arith.constant dense<0.000000e+00> : vector<1x576xf32>
    %1 = vector.multi_reduction <add>, %0, %cst [2] : vector<1x576x49xf32> to vector<1x576xf32>
    %2 = vector.shape_cast %1 : vector<1x576xf32> to vector<1x576x1xf32>
    %3 = arith.mulf %0, %0 : vector<1x576x49xf32>
    %cst_2 = arith.constant dense<0.000000e+00> : vector<1x576xf32>
    %4 = vector.multi_reduction <add>, %3, %cst_2 [2] : vector<1x576x49xf32> to vector<1x576xf32>
    %5 = vector.shape_cast %4 : vector<1x576xf32> to vector<1x576x1xf32>
    %cst_3 = arith.constant dense<0.000000e+00> : vector<576x1xf32>
    %6 = vector.multi_reduction <add>, %2, %cst_3 [0] : vector<1x576x1xf32> to vector<576x1xf32>
    %7 = vector.shape_cast %6 : vector<576x1xf32> to vector<1x576x1xf32>
    %cst_4 = arith.constant dense<0.000000e+00> : vector<576x1xf32>
    %8 = vector.multi_reduction <add>, %5, %cst_4 [0] : vector<1x576x1xf32> to vector<576x1xf32>
    %9 = vector.shape_cast %8 : vector<576x1xf32> to vector<1x576x1xf32>
    %cst_5 = arith.constant 0.0204081628 : f32
    %10 = vector.broadcast %cst_5 : f32 to vector<1x576x1xf32>
    %11 = arith.mulf %7, %10 : vector<1x576x1xf32>
    %cst_6 = arith.constant 0.0204081628 : f32
    %12 = vector.broadcast %cst_6 : f32 to vector<1x576x1xf32>
    %13 = arith.mulf %9, %12 : vector<1x576x1xf32>
    %14 = arith.mulf %11, %11 : vector<1x576x1xf32>
    %15 = arith.subf %13, %14 : vector<1x576x1xf32>
    %cst_7 = arith.constant 0.000000e+00 : f32
    %16 = vector.broadcast %cst_7 : f32 to vector<1x576x1xf32>
    %17 = arith.maximumf %15, %16 : vector<1x576x1xf32>
    %cst_8 = arith.constant 9.99999974E-6 : f32
    %18 = vector.broadcast %cst_8 : f32 to vector<1x576x1xf32>
    %19 = arith.addf %17, %18 : vector<1x576x1xf32>
    %20 = math.rsqrt %19 : vector<1x576x1xf32>
    %c0_9 = arith.constant 0 : index
    %c0_10 = arith.constant 0 : index
    %c0_11 = arith.constant 0 : index
    %21 = vector.load %arg2[%c0_9, %c0_10, %c0_11] : memref<1x576x1xf32, #tpu.memory_space<vmem>>, vector<1x576x1xf32>
    %22 = arith.mulf %21, %20 : vector<1x576x1xf32>
    %c0_12 = arith.constant 0 : index
    %c0_13 = arith.constant 0 : index
    %c0_14 = arith.constant 0 : index
    %23 = vector.load %arg3[%c0_12, %c0_13, %c0_14] : memref<1x576x1xf32, #tpu.memory_space<vmem>>, vector<1x576x1xf32>
    %24 = arith.mulf %11, %22 : vector<1x576x1xf32>
    %25 = arith.subf %23, %24 : vector<1x576x1xf32>
    %26 = vector.broadcast %22 : vector<1x576x1xf32> to vector<1x576x49xf32>
    %27 = arith.mulf %0, %26 : vector<1x576x49xf32>
    %28 = vector.broadcast %25 : vector<1x576x1xf32> to vector<1x576x49xf32>
    %29 = arith.addf %27, %28 : vector<1x576x49xf32>
    %c0_15 = arith.constant 0 : index
    %c0_16 = arith.constant 0 : index
    %c0_17 = arith.constant 0 : index
    %30 = vector.load %arg4[%c0_15, %c0_16, %c0_17] : memref<1x576x49xf32, #tpu.memory_space<vmem>>, vector<1x576x49xf32>
    tpu.vector_store %arg4[%c0_15, %c0_16, %c0_17], %29 {strides = array<i32>} : memref<1x576x49xf32, #tpu.memory_space<vmem>>, vector<1x576x49xf32>,
    return
  }
  func.func @transform_0(%arg0: i32) -> (i32, i32, i32) {
    %c0_i32 = arith.constant 0 : i32
    %c0_i32_0 = arith.constant 0 : i32
    %c0_i32_1 = arith.constant 0 : i32
    return %c0_i32, %arg0, %c0_i32_0 : i32, i32, i32
  }
  func.func @transform_1(%arg0: i32) -> (i32, i32, i32) {
    %c0_i32 = arith.constant 0 : i32
    %c0_i32_0 = arith.constant 0 : i32
    %c0_i32_1 = arith.constant 0 : i32
    return %c0_i32, %arg0, %c0_i32_0 : i32, i32, i32
  }
  func.func @transform_2(%arg0: i32) -> (i32, i32, i32) {
    %c0_i32 = arith.constant 0 : i32
    %c0_i32_0 = arith.constant 0 : i32
    %c0_i32_1 = arith.constant 0 : i32
    return %c0_i32, %arg0, %c0_i32_0 : i32, i32, i32
  }
  func.func @transform_3(%arg0: i32) -> (i32, i32, i32) {
    %c0_i32 = arith.constant 0 : i32
    %c0_i32_0 = arith.constant 0 : i32
    %c0_i32_1 = arith.constant 0 : i32
    return %c0_i32, %arg0, %c0_i32_0 : i32, i32, i32
  }
}

</mosaic_0001>

<llo_original>
// kernel: tpu_custom_call.1
$region0: #{tpu_custom_call.1}
  #allocation0 [shape = 'u32[]', space=smem, size = 0x4, offset = 0x4, fixed_abs, tag = 'smem constant byte address 0x4 - core index']
  #allocation1 [shape = 'u32[144,128]{1,0:T(1,128)}', space=vmem, size = 0x12000, scoped, tag = 'internal scratch']
  %s0 = inlined_call_operand.vmem [shape: f32[1,576,49], index: 0, kind: input, shape index: {}]
  %s1 = inlined_call_operand.vmem [shape: f32[1,576,1], index: 1, kind: input, shape index: {}]
  %s2 = inlined_call_operand.vmem [shape: f32[1,576,1], index: 2, kind: input, shape index: {}]
  %s3 = inlined_call_operand.vmem [shape: f32[1,576,49], index: 3, kind: output, shape index: {}]
  %s4 = sld [smem:[#allocation0]]
  $region22: #{tpu_custom_call.1} parent=0
    _
  %s6 = ssub.s32 1, %s4
  %s7 = scalar_select 0, %s6, %s4
  // Predicated region
  $region2: #{tpu_custom_call.1} parent=0 // pred_check
    _
  $region3: #{tpu_custom_call.1} parent=0 // pred_check_branch
    %9 = sbr.rel (0) target = $region5
  $region4: #{tpu_custom_call.1} parent=0 // pred_region
    _
  $region5: #{tpu_custom_call.1} parent=0 // pred_fallthru
    _
  // Predicated region
  $region6: #{tpu_custom_call.1} parent=0 // pred_check
    _
  $region7: #{tpu_custom_call.1} parent=0 // pred_check_branch
    %11 = sbr.rel (0) target = $region9
  $region8: #{tpu_custom_call.1} parent=0 // pred_region
    _
  $region9: #{tpu_custom_call.1} parent=0 // pred_fallthru
    _
  // Predicated region
  $region10: #{tpu_custom_call.1} parent=0 // pred_check
    _
  $region11: #{tpu_custom_call.1} parent=0 // pred_check_branch
    %13 = sbr.rel (0) target = $region13
  $region12: #{tpu_custom_call.1} parent=0 // pred_region
    _
  $region13: #{tpu_custom_call.1} parent=0 // pred_fallthru
    _
  %v14 = vld [vmem:[%s0] sm:$0xff]
  %v15 = vld [vmem:[%s0 + $0x8] sm:$0xff]
  %v16 = vld [vmem:[%s0 + $0x10] sm:$0xff]
  %v17 = vld [vmem:[%s0 + $0x18] sm:$0xff]
  %v18 = vld [vmem:[%s0 + $0x20] sm:$0xff]
  %v19 = vld [vmem:[%s0 + $0x28] sm:$0xff]
  %v20 = vld [vmem:[%s0 + $0x30] sm:$0xff]
  %v21 = vld [vmem:[%s0 + $0x38] sm:$0xff]
  %v22 = vld [vmem:[%s0 + $0x40] sm:$0xff]
  %v23 = vld [vmem:[%s0 + $0x48] sm:$0xff]
  %v24 = vld [vmem:[%s0 + $0x50] sm:$0xff]
  %v25 = vld [vmem:[%s0 + $0x58] sm:$0xff]
  %v26 = vld [vmem:[%s0 + $0x60] sm:$0xff]
  %v27 = vld [vmem:[%s0 + $0x68] sm:$0xff]
  %v28 = vld [vmem:[%s0 + $0x70] sm:$0xff]
  %v29 = vld [vmem:[%s0 + $0x78] sm:$0xff]
  %v30 = vld [vmem:[%s0 + $0x80] sm:$0xff]
  %v31 = vld [vmem:[%s0 + $0x88] sm:$0xff]
  %v32 = vld [vmem:[%s0 + $0x90] sm:$0xff]
  %v33 = vld [vmem:[%s0 + $0x98] sm:$0xff]
  %v34 = vld [vmem:[%s0 + $0xa0] sm:$0xff]
  %v35 = vld [vmem:[%s0 + $0xa8] sm:$0xff]
  %v36 = vld [vmem:[%s0 + $0xb0] sm:$0xff]
  %v37 = vld [vmem:[%s0 + $0xb8] sm:$0xff]
  %v38 = vld [vmem:[%s0 + $0xc0] sm:$0xff]
  %v39 = vld [vmem:[%s0 + $0xc8] sm:$0xff]
  %v40 = vld [vmem:[%s0 + $0xd0] sm:$0xff]
  %v41 = vld [vmem:[%s0 + $0xd8] sm:$0xff]
  %v42 = vld [vmem:[%s0 + $0xe0] sm:$0xff]
  %v43 = vld [vmem:[%s0 + $0xe8] sm:$0xff]
  %v44 = vld [vmem:[%s0 + $0xf0] sm:$0xff]
  %v45 = vld [vmem:[%s0 + $0xf8] sm:$0xff]
  %v46 = vld [vmem:[%s0 + $0x100] sm:$0xff]
  %v47 = vld [vmem:[%s0 + $0x108] sm:$0xff]
  %v48 = vld [vmem:[%s0 + $0x110] sm:$0xff]
  %v49 = vld [vmem:[%s0 + $0x118] sm:$0xff]
  %v50 = vld [vmem:[%s0 + $0x120] sm:$0xff]
  %v51 = vld [vmem:[%s0 + $0x128] sm:$0xff]
  %v52 = vld [vmem:[%s0 + $0x130] sm:$0xff]
  %v53 = vld [vmem:[%s0 + $0x138] sm:$0xff]
  %v54 = vld [vmem:[%s0 + $0x140] sm:$0xff]
  %v55 = vld [vmem:[%s0 + $0x148] sm:$0xff]
  %v56 = vld [vmem:[%s0 + $0x150] sm:$0xff]
  %v57 = vld [vmem:[%s0 + $0x158] sm:$0xff]
  %v58 = vld [vmem:[%s0 + $0x160] sm:$0xff]
  %v59 = vld [vmem:[%s0 + $0x168] sm:$0xff]
  %v60 = vld [vmem:[%s0 + $0x170] sm:$0xff]
  %v61 = vld [vmem:[%s0 + $0x178] sm:$0xff]
  %v62 = vld [vmem:[%s0 + $0x180] sm:$0xff]
  %v63 = vld [vmem:[%s0 + $0x188] sm:$0xff]
  %v64 = vld [vmem:[%s0 + $0x190] sm:$0xff]
  %v65 = vld [vmem:[%s0 + $0x198] sm:$0xff]
  %v66 = vld [vmem:[%s0 + $0x1a0] sm:$0xff]
  %v67 = vld [vmem:[%s0 + $0x1a8] sm:$0xff]
  %v68 = vld [vmem:[%s0 + $0x1b0] sm:$0xff]
  %v69 = vld [vmem:[%s0 + $0x1b8] sm:$0xff]
  %v70 = vld [vmem:[%s0 + $0x1c0] sm:$0xff]
  %v71 = vld [vmem:[%s0 + $0x1c8] sm:$0xff]
  %v72 = vld [vmem:[%s0 + $0x1d0] sm:$0xff]
  %v73 = vld [vmem:[%s0 + $0x1d8] sm:$0xff]
  %v74 = vld [vmem:[%s0 + $0x1e0] sm:$0xff]
  %v75 = vld [vmem:[%s0 + $0x1e8] sm:$0xff]
  %v76 = vld [vmem:[%s0 + $0x1f0] sm:$0xff]
  %v77 = vld [vmem:[%s0 + $0x1f8] sm:$0xff]
  %v78 = vld [vmem:[%s0 + $0x200] sm:$0xff]
  %v79 = vld [vmem:[%s0 + $0x208] sm:$0xff]
  %v80 = vld [vmem:[%s0 + $0x210] sm:$0xff]
  %v81 = vld [vmem:[%s0 + $0x218] sm:$0xff]
  %v82 = vld [vmem:[%s0 + $0x220] sm:$0xff]
  %v83 = vld [vmem:[%s0 + $0x228] sm:$0xff]
  %v84 = vld [vmem:[%s0 + $0x230] sm:$0xff]
  %v85 = vld [vmem:[%s0 + $0x238] sm:$0xff]
  %vm86 = vcmask 400384
  %v87 = vsel %vm86, %v14, 0.0
  %88 = vadd.xlane.f32.xlu0 %v87
  %v89 = vpop.xlane.xlu0 %88
  %v90 = vsel %vm86, %v15, 0.0
  %91 = vadd.xlane.f32.xlu0 %v90
  %v92 = vpop.xlane.xlu0 %91
  %v93 = vsel %vm86, %v16, 0.0
  %94 = vadd.xlane.f32.xlu0 %v93
  %v95 = vpop.xlane.xlu0 %94
  %v96 = vsel %vm86, %v17, 0.0
  %97 = vadd.xlane.f32.xlu0 %v96
  %v98 = vpop.xlane.xlu0 %97
  %v99 = vsel %vm86, %v18, 0.0
  %100 = vadd.xlane.f32.xlu0 %v99
  %v101 = vpop.xlane.xlu0 %100
  %v102 = vsel %vm86, %v19, 0.0
  %103 = vadd.xlane.f32.xlu0 %v102
  %v104 = vpop.xlane.xlu0 %103
  %v105 = vsel %vm86, %v20, 0.0
  %106 = vadd.xlane.f32.xlu0 %v105
  %v107 = vpop.xlane.xlu0 %106
  %v108 = vsel %vm86, %v21, 0.0
  %109 = vadd.xlane.f32.xlu0 %v108
  %v110 = vpop.xlane.xlu0 %109
  %v111 = vsel %vm86, %v22, 0.0
  %112 = vadd.xlane.f32.xlu0 %v111
  %v113 = vpop.xlane.xlu0 %112
  %v114 = vsel %vm86, %v23, 0.0
  %115 = vadd.xlane.f32.xlu0 %v114
  %v116 = vpop.xlane.xlu0 %115
  %v117 = vsel %vm86, %v24, 0.0
  %118 = vadd.xlane.f32.xlu0 %v117
  %v119 = vpop.xlane.xlu0 %118
  %v120 = vsel %vm86, %v25, 0.0
  %121 = vadd.xlane.f32.xlu0 %v120
  %v122 = vpop.xlane.xlu0 %121
  %v123 = vsel %vm86, %v26, 0.0
  %124 = vadd.xlane.f32.xlu0 %v123
  %v125 = vpop.xlane.xlu0 %124
  %v126 = vsel %vm86, %v27, 0.0
  %127 = vadd.xlane.f32.xlu0 %v126
  %v128 = vpop.xlane.xlu0 %127
  %v129 = vsel %vm86, %v28, 0.0
  %130 = vadd.xlane.f32.xlu0 %v129
  %v131 = vpop.xlane.xlu0 %130
  %v132 = vsel %vm86, %v29, 0.0
  %133 = vadd.xlane.f32.xlu0 %v132
  %v134 = vpop.xlane.xlu0 %133
  %v135 = vsel %vm86, %v30, 0.0
  %136 = vadd.xlane.f32.xlu0 %v135
  %v137 = vpop.xlane.xlu0 %136
  %v138 = vsel %vm86, %v31, 0.0
  %139 = vadd.xlane.f32.xlu0 %v138
  %v140 = vpop.xlane.xlu0 %139
  %v141 = vsel %vm86, %v32, 0.0
  %142 = vadd.xlane.f32.xlu0 %v141
  %v143 = vpop.xlane.xlu0 %142
  %v144 = vsel %vm86, %v33, 0.0
  %145 = vadd.xlane.f32.xlu0 %v144
  %v146 = vpop.xlane.xlu0 %145
  %v147 = vsel %vm86, %v34, 0.0
  %148 = vadd.xlane.f32.xlu0 %v147
  %v149 = vpop.xlane.xlu0 %148
  %v150 = vsel %vm86, %v35, 0.0
  %151 = vadd.xlane.f32.xlu0 %v150
  %v152 = vpop.xlane.xlu0 %151
  %v153 = vsel %vm86, %v36, 0.0
  %154 = vadd.xlane.f32.xlu0 %v153
  %v155 = vpop.xlane.xlu0 %154
  %v156 = vsel %vm86, %v37, 0.0
  %157 = vadd.xlane.f32.xlu0 %v156
  %v158 = vpop.xlane.xlu0 %157
  %v159 = vsel %vm86, %v38, 0.0
  %160 = vadd.xlane.f32.xlu0 %v159
  %v161 = vpop.xlane.xlu0 %160
  %v162 = vsel %vm86, %v39, 0.0
  %163 = vadd.xlane.f32.xlu0 %v162
  %v164 = vpop.xlane.xlu0 %163
  %v165 = vsel %vm86, %v40, 0.0
  %166 = vadd.xlane.f32.xlu0 %v165
  %v167 = vpop.xlane.xlu0 %166
  %v168 = vsel %vm86, %v41, 0.0
  %169 = vadd.xlane.f32.xlu0 %v168
  %v170 = vpop.xlane.xlu0 %169
  %v171 = vsel %vm86, %v42, 0.0
  %172 = vadd.xlane.f32.xlu0 %v171
  %v173 = vpop.xlane.xlu0 %172
  %v174 = vsel %vm86, %v43, 0.0
  %175 = vadd.xlane.f32.xlu0 %v174
  %v176 = vpop.xlane.xlu0 %175
  %v177 = vsel %vm86, %v44, 0.0
  %178 = vadd.xlane.f32.xlu0 %v177
  %v179 = vpop.xlane.xlu0 %178
  %v180 = vsel %vm86, %v45, 0.0
  %181 = vadd.xlane.f32.xlu0 %v180
  %v182 = vpop.xlane.xlu0 %181
  %v183 = vsel %vm86, %v46, 0.0
  %184 = vadd.xlane.f32.xlu0 %v183
  %v185 = vpop.xlane.xlu0 %184
  %v186 = vsel %vm86, %v47, 0.0
  %187 = vadd.xlane.f32.xlu0 %v186
  %v188 = vpop.xlane.xlu0 %187
  %v189 = vsel %vm86, %v48, 0.0
  %190 = vadd.xlane.f32.xlu0 %v189
  %v191 = vpop.xlane.xlu0 %190
  %v192 = vsel %vm86, %v49, 0.0
  %193 = vadd.xlane.f32.xlu0 %v192
  %v194 = vpop.xlane.xlu0 %193
  %v195 = vsel %vm86, %v50, 0.0
  %196 = vadd.xlane.f32.xlu0 %v195
  %v197 = vpop.xlane.xlu0 %196
  %v198 = vsel %vm86, %v51, 0.0
  %199 = vadd.xlane.f32.xlu0 %v198
  %v200 = vpop.xlane.xlu0 %199
  %v201 = vsel %vm86, %v52, 0.0
  %202 = vadd.xlane.f32.xlu0 %v201
  %v203 = vpop.xlane.xlu0 %202
  %v204 = vsel %vm86, %v53, 0.0
  %205 = vadd.xlane.f32.xlu0 %v204
  %v206 = vpop.xlane.xlu0 %205
  %v207 = vsel %vm86, %v54, 0.0
  %208 = vadd.xlane.f32.xlu0 %v207
  %v209 = vpop.xlane.xlu0 %208
  %v210 = vsel %vm86, %v55, 0.0
  %211 = vadd.xlane.f32.xlu0 %v210
  %v212 = vpop.xlane.xlu0 %211
  %v213 = vsel %vm86, %v56, 0.0
  %214 = vadd.xlane.f32.xlu0 %v213
  %v215 = vpop.xlane.xlu0 %214
  %v216 = vsel %vm86, %v57, 0.0
  %217 = vadd.xlane.f32.xlu0 %v216
  %v218 = vpop.xlane.xlu0 %217
  %v219 = vsel %vm86, %v58, 0.0
  %220 = vadd.xlane.f32.xlu0 %v219
  %v221 = vpop.xlane.xlu0 %220
  %v222 = vsel %vm86, %v59, 0.0
  %223 = vadd.xlane.f32.xlu0 %v222
  %v224 = vpop.xlane.xlu0 %223
  %v225 = vsel %vm86, %v60, 0.0
  %226 = vadd.xlane.f32.xlu0 %v225
  %v227 = vpop.xlane.xlu0 %226
  %v228 = vsel %vm86, %v61, 0.0
  %229 = vadd.xlane.f32.xlu0 %v228
  %v230 = vpop.xlane.xlu0 %229
  %v231 = vsel %vm86, %v62, 0.0
  %232 = vadd.xlane.f32.xlu0 %v231
  %v233 = vpop.xlane.xlu0 %232
  %v234 = vsel %vm86, %v63, 0.0
  %235 = vadd.xlane.f32.xlu0 %v234
  %v236 = vpop.xlane.xlu0 %235
  %v237 = vsel %vm86, %v64, 0.0
  %238 = vadd.xlane.f32.xlu0 %v237
  %v239 = vpop.xlane.xlu0 %238
  %v240 = vsel %vm86, %v65, 0.0
  %241 = vadd.xlane.f32.xlu0 %v240
  %v242 = vpop.xlane.xlu0 %241
  %v243 = vsel %vm86, %v66, 0.0
  %244 = vadd.xlane.f32.xlu0 %v243
  %v245 = vpop.xlane.xlu0 %244
  %v246 = vsel %vm86, %v67, 0.0
  %247 = vadd.xlane.f32.xlu0 %v246
  %v248 = vpop.xlane.xlu0 %247
  %v249 = vsel %vm86, %v68, 0.0
  %250 = vadd.xlane.f32.xlu0 %v249
  %v251 = vpop.xlane.xlu0 %250
  %v252 = vsel %vm86, %v69, 0.0
  %253 = vadd.xlane.f32.xlu0 %v252
  %v254 = vpop.xlane.xlu0 %253
  %v255 = vsel %vm86, %v70, 0.0
  %256 = vadd.xlane.f32.xlu0 %v255
  %v257 = vpop.xlane.xlu0 %256
  %v258 = vsel %vm86, %v71, 0.0
  %259 = vadd.xlane.f32.xlu0 %v258
  %v260 = vpop.xlane.xlu0 %259
  %v261 = vsel %vm86, %v72, 0.0
  %262 = vadd.xlane.f32.xlu0 %v261
  %v263 = vpop.xlane.xlu0 %262
  %v264 = vsel %vm86, %v73, 0.0
  %265 = vadd.xlane.f32.xlu0 %v264
  %v266 = vpop.xlane.xlu0 %265
  %v267 = vsel %vm86, %v74, 0.0
  %268 = vadd.xlane.f32.xlu0 %v267
  %v269 = vpop.xlane.xlu0 %268
  %v270 = vsel %vm86, %v75, 0.0
  %271 = vadd.xlane.f32.xlu0 %v270
  %v272 = vpop.xlane.xlu0 %271
  %v273 = vsel %vm86, %v76, 0.0
  %274 = vadd.xlane.f32.xlu0 %v273
  %v275 = vpop.xlane.xlu0 %274
  %v276 = vsel %vm86, %v77, 0.0
  %277 = vadd.xlane.f32.xlu0 %v276
  %v278 = vpop.xlane.xlu0 %277
  %v279 = vsel %vm86, %v78, 0.0
  %280 = vadd.xlane.f32.xlu0 %v279
  %v281 = vpop.xlane.xlu0 %280
  %v282 = vsel %vm86, %v79, 0.0
  %283 = vadd.xlane.f32.xlu0 %v282
  %v284 = vpop.xlane.xlu0 %283
  %v285 = vsel %vm86, %v80, 0.0
  %286 = vadd.xlane.f32.xlu0 %v285
  %v287 = vpop.xlane.xlu0 %286
  %v288 = vsel %vm86, %v81, 0.0
  %289 = vadd.xlane.f32.xlu0 %v288
  %v290 = vpop.xlane.xlu0 %289
  %v291 = vsel %vm86, %v82, 0.0
  %292 = vadd.xlane.f32.xlu0 %v291
  %v293 = vpop.xlane.xlu0 %292
  %v294 = vsel %vm86, %v83, 0.0
  %295 = vadd.xlane.f32.xlu0 %v294
  %v296 = vpop.xlane.xlu0 %295
  %v297 = vsel %vm86, %v84, 0.0
  %298 = vadd.xlane.f32.xlu0 %v297
  %v299 = vpop.xlane.xlu0 %298
  %v300 = vsel %vm86, %v85, 0.0
  %301 = vadd.xlane.f32.xlu0 %v300
  %v302 = vpop.xlane.xlu0 %301
  %v303 = vmul.f32 %v14, %v14
  %v304 = vmul.f32 %v15, %v15
  %v305 = vmul.f32 %v16, %v16
  %v306 = vmul.f32 %v17, %v17
  %v307 = vmul.f32 %v18, %v18
  %v308 = vmul.f32 %v19, %v19
  %v309 = vmul.f32 %v20, %v20
  %v310 = vmul.f32 %v21, %v21
  %v311 = vmul.f32 %v22, %v22
  %v312 = vmul.f32 %v23, %v23
  %v313 = vmul.f32 %v24, %v24
  %v314 = vmul.f32 %v25, %v25
  %v315 = vmul.f32 %v26, %v26
  %v316 = vmul.f32 %v27, %v27
  %v317 = vmul.f32 %v28, %v28
  %v318 = vmul.f32 %v29, %v29
  %v319 = vmul.f32 %v30, %v30
  %v320 = vmul.f32 %v31, %v31
  %v321 = vmul.f32 %v32, %v32
  %v322 = vmul.f32 %v33, %v33
  %v323 = vmul.f32 %v34, %v34
  %v324 = vmul.f32 %v35, %v35
  %v325 = vmul.f32 %v36, %v36
  %v326 = vmul.f32 %v37, %v37
  %v327 = vmul.f32 %v38, %v38
  %v328 = vmul.f32 %v39, %v39
  %v329 = vmul.f32 %v40, %v40
  %v330 = vmul.f32 %v41, %v41
  %v331 = vmul.f32 %v42, %v42
  %v332 = vmul.f32 %v43, %v43
  %v333 = vmul.f32 %v44, %v44
  %v334 = vmul.f32 %v45, %v45
  %v335 = vmul.f32 %v46, %v46
  %v336 = vmul.f32 %v47, %v47
  %v337 = vmul.f32 %v48, %v48
  %v338 = vmul.f32 %v49, %v49
  %v339 = vmul.f32 %v50, %v50
  %v340 = vmul.f32 %v51, %v51
  %v341 = vmul.f32 %v52, %v52
  %v342 = vmul.f32 %v53, %v53
  %v343 = vmul.f32 %v54, %v54
  %v344 = vmul.f32 %v55, %v55
  %v345 = vmul.f32 %v56, %v56
  %v346 = vmul.f32 %v57, %v57
  %v347 = vmul.f32 %v58, %v58
  %v348 = vmul.f32 %v59, %v59
  %v349 = vmul.f32 %v60, %v60
  %v350 = vmul.f32 %v61, %v61
  %v351 = vmul.f32 %v62, %v62
  %v352 = vmul.f32 %v63, %v63
  %v353 = vmul.f32 %v64, %v64
  %v354 = vmul.f32 %v65, %v65
  %v355 = vmul.f32 %v66, %v66
  %v356 = vmul.f32 %v67, %v67
  %v357 = vmul.f32 %v68, %v68
  %v358 = vmul.f32 %v69, %v69
  %v359 = vmul.f32 %v70, %v70
  %v360 = vmul.f32 %v71, %v71
  %v361 = vmul.f32 %v72, %v72
  %v362 = vmul.f32 %v73, %v73
  %v363 = vmul.f32 %v74, %v74
  %v364 = vmul.f32 %v75, %v75
  %v365 = vmul.f32 %v76, %v76
  %v366 = vmul.f32 %v77, %v77
  %v367 = vmul.f32 %v78, %v78
  %v368 = vmul.f32 %v79, %v79
  %v369 = vmul.f32 %v80, %v80
  %v370 = vmul.f32 %v81, %v81
  %v371 = vmul.f32 %v82, %v82
  %v372 = vmul.f32 %v83, %v83
  %v373 = vmul.f32 %v84, %v84
  %v374 = vmul.f32 %v85, %v85
  %v375 = vsel %vm86, %v303, 0.0
  %376 = vadd.xlane.f32.xlu0 %v375
  %v377 = vpop.xlane.xlu0 %376
  %v378 = vsel %vm86, %v304, 0.0
  %379 = vadd.xlane.f32.xlu0 %v378
  %v380 = vpop.xlane.xlu0 %379
  %v381 = vsel %vm86, %v305, 0.0
  %382 = vadd.xlane.f32.xlu0 %v381
  %v383 = vpop.xlane.xlu0 %382
  %v384 = vsel %vm86, %v306, 0.0
  %385 = vadd.xlane.f32.xlu0 %v384
  %v386 = vpop.xlane.xlu0 %385
  %v387 = vsel %vm86, %v307, 0.0
  %388 = vadd.xlane.f32.xlu0 %v387
  %v389 = vpop.xlane.xlu0 %388
  %v390 = vsel %vm86, %v308, 0.0
  %391 = vadd.xlane.f32.xlu0 %v390
  %v392 = vpop.xlane.xlu0 %391
  %v393 = vsel %vm86, %v309, 0.0
  %394 = vadd.xlane.f32.xlu0 %v393
  %v395 = vpop.xlane.xlu0 %394
  %v396 = vsel %vm86, %v310, 0.0
  %397 = vadd.xlane.f32.xlu0 %v396
  %v398 = vpop.xlane.xlu0 %397
  %v399 = vsel %vm86, %v311, 0.0
  %400 = vadd.xlane.f32.xlu0 %v399
  %v401 = vpop.xlane.xlu0 %400
  %v402 = vsel %vm86, %v312, 0.0
  %403 = vadd.xlane.f32.xlu0 %v402
  %v404 = vpop.xlane.xlu0 %403
  %v405 = vsel %vm86, %v313, 0.0
  %406 = vadd.xlane.f32.xlu0 %v405
  %v407 = vpop.xlane.xlu0 %406
  %v408 = vsel %vm86, %v314, 0.0
  %409 = vadd.xlane.f32.xlu0 %v408
  %v410 = vpop.xlane.xlu0 %409
  %v411 = vsel %vm86, %v315, 0.0
  %412 = vadd.xlane.f32.xlu0 %v411
  %v413 = vpop.xlane.xlu0 %412
  %v414 = vsel %vm86, %v316, 0.0
  %415 = vadd.xlane.f32.xlu0 %v414
  %v416 = vpop.xlane.xlu0 %415
  %v417 = vsel %vm86, %v317, 0.0
  %418 = vadd.xlane.f32.xlu0 %v417
  %v419 = vpop.xlane.xlu0 %418
  %v420 = vsel %vm86, %v318, 0.0
  %421 = vadd.xlane.f32.xlu0 %v420
  %v422 = vpop.xlane.xlu0 %421
  %v423 = vsel %vm86, %v319, 0.0
  %424 = vadd.xlane.f32.xlu0 %v423
  %v425 = vpop.xlane.xlu0 %424
  %v426 = vsel %vm86, %v320, 0.0
  %427 = vadd.xlane.f32.xlu0 %v426
  %v428 = vpop.xlane.xlu0 %427
  %v429 = vsel %vm86, %v321, 0.0
  %430 = vadd.xlane.f32.xlu0 %v429
  %v431 = vpop.xlane.xlu0 %430
  %v432 = vsel %vm86, %v322, 0.0
  %433 = vadd.xlane.f32.xlu0 %v432
  %v434 = vpop.xlane.xlu0 %433
  %v435 = vsel %vm86, %v323, 0.0
  %436 = vadd.xlane.f32.xlu0 %v435
  %v437 = vpop.xlane.xlu0 %436
  %v438 = vsel %vm86, %v324, 0.0
  %439 = vadd.xlane.f32.xlu0 %v438
  %v440 = vpop.xlane.xlu0 %439
  %v441 = vsel %vm86, %v325, 0.0
  %442 = vadd.xlane.f32.xlu0 %v441
  %v443 = vpop.xlane.xlu0 %442
  %v444 = vsel %vm86, %v326, 0.0
  %445 = vadd.xlane.f32.xlu0 %v444
  %v446 = vpop.xlane.xlu0 %445
  %v447 = vsel %vm86, %v327, 0.0
  %448 = vadd.xlane.f32.xlu0 %v447
  %v449 = vpop.xlane.xlu0 %448
  %v450 = vsel %vm86, %v328, 0.0
  %451 = vadd.xlane.f32.xlu0 %v450
  %v452 = vpop.xlane.xlu0 %451
  %v453 = vsel %vm86, %v329, 0.0
  %454 = vadd.xlane.f32.xlu0 %v453
  %v455 = vpop.xlane.xlu0 %454
  %v456 = vsel %vm86, %v330, 0.0
  %457 = vadd.xlane.f32.xlu0 %v456
  %v458 = vpop.xlane.xlu0 %457
  %v459 = vsel %vm86, %v331, 0.0
  %460 = vadd.xlane.f32.xlu0 %v459
  %v461 = vpop.xlane.xlu0 %460
  %v462 = vsel %vm86, %v332, 0.0
  %463 = vadd.xlane.f32.xlu0 %v462
  %v464 = vpop.xlane.xlu0 %463
  %v465 = vsel %vm86, %v333, 0.0
  %466 = vadd.xlane.f32.xlu0 %v465
  %v467 = vpop.xlane.xlu0 %466
  %v468 = vsel %vm86, %v334, 0.0
  %469 = vadd.xlane.f32.xlu0 %v468
  %v470 = vpop.xlane.xlu0 %469
  %v471 = vsel %vm86, %v335, 0.0
  %472 = vadd.xlane.f32.xlu0 %v471
  %v473 = vpop.xlane.xlu0 %472
  %v474 = vsel %vm86, %v336, 0.0
  %475 = vadd.xlane.f32.xlu0 %v474
  %v476 = vpop.xlane.xlu0 %475
  %v477 = vsel %vm86, %v337, 0.0
  %478 = vadd.xlane.f32.xlu0 %v477
  %v479 = vpop.xlane.xlu0 %478
  %v480 = vsel %vm86, %v338, 0.0
  %481 = vadd.xlane.f32.xlu0 %v480
  %v482 = vpop.xlane.xlu0 %481
  %v483 = vsel %vm86, %v339, 0.0
  %484 = vadd.xlane.f32.xlu0 %v483
  %v485 = vpop.xlane.xlu0 %484
  %v486 = vsel %vm86, %v340, 0.0
  %487 = vadd.xlane.f32.xlu0 %v486
  %v488 = vpop.xlane.xlu0 %487
  %v489 = vsel %vm86, %v341, 0.0
  %490 = vadd.xlane.f32.xlu0 %v489
  %v491 = vpop.xlane.xlu0 %490
  %v492 = vsel %vm86, %v342, 0.0
  %493 = vadd.xlane.f32.xlu0 %v492
  %v494 = vpop.xlane.xlu0 %493
  %v495 = vsel %vm86, %v343, 0.0
  %496 = vadd.xlane.f32.xlu0 %v495
  %v497 = vpop.xlane.xlu0 %496
  %v498 = vsel %vm86, %v344, 0.0
  %499 = vadd.xlane.f32.xlu0 %v498
  %v500 = vpop.xlane.xlu0 %499
  %v501 = vsel %vm86, %v345, 0.0
  %502 = vadd.xlane.f32.xlu0 %v501
  %v503 = vpop.xlane.xlu0 %502
  %v504 = vsel %vm86, %v346, 0.0
  %505 = vadd.xlane.f32.xlu0 %v504
  %v506 = vpop.xlane.xlu0 %505
  %v507 = vsel %vm86, %v347, 0.0
  %508 = vadd.xlane.f32.xlu0 %v507
  %v509 = vpop.xlane.xlu0 %508
  %v510 = vsel %vm86, %v348, 0.0
  %511 = vadd.xlane.f32.xlu0 %v510
  %v512 = vpop.xlane.xlu0 %511
  %v513 = vsel %vm86, %v349, 0.0
  %514 = vadd.xlane.f32.xlu0 %v513
  %v515 = vpop.xlane.xlu0 %514
  %v516 = vsel %vm86, %v350, 0.0
  %517 = vadd.xlane.f32.xlu0 %v516
  %v518 = vpop.xlane.xlu0 %517
  %v519 = vsel %vm86, %v351, 0.0
  %520 = vadd.xlane.f32.xlu0 %v519
  %v521 = vpop.xlane.xlu0 %520
  %v522 = vsel %vm86, %v352, 0.0
  %523 = vadd.xlane.f32.xlu0 %v522
  %v524 = vpop.xlane.xlu0 %523
  %v525 = vsel %vm86, %v353, 0.0
  %526 = vadd.xlane.f32.xlu0 %v525
  %v527 = vpop.xlane.xlu0 %526
  %v528 = vsel %vm86, %v354, 0.0
  %529 = vadd.xlane.f32.xlu0 %v528
  %v530 = vpop.xlane.xlu0 %529
  %v531 = vsel %vm86, %v355, 0.0
  %532 = vadd.xlane.f32.xlu0 %v531
  %v533 = vpop.xlane.xlu0 %532
  %v534 = vsel %vm86, %v356, 0.0
  %535 = vadd.xlane.f32.xlu0 %v534
  %v536 = vpop.xlane.xlu0 %535
  %v537 = vsel %vm86, %v357, 0.0
  %538 = vadd.xlane.f32.xlu0 %v537
  %v539 = vpop.xlane.xlu0 %538
  %v540 = vsel %vm86, %v358, 0.0
  %541 = vadd.xlane.f32.xlu0 %v540
  %v542 = vpop.xlane.xlu0 %541
  %v543 = vsel %vm86, %v359, 0.0
  %544 = vadd.xlane.f32.xlu0 %v543
  %v545 = vpop.xlane.xlu0 %544
  %v546 = vsel %vm86, %v360, 0.0
  %547 = vadd.xlane.f32.xlu0 %v546
  %v548 = vpop.xlane.xlu0 %547
  %v549 = vsel %vm86, %v361, 0.0
  %550 = vadd.xlane.f32.xlu0 %v549
  %v551 = vpop.xlane.xlu0 %550
  %v552 = vsel %vm86, %v362, 0.0
  %553 = vadd.xlane.f32.xlu0 %v552
  %v554 = vpop.xlane.xlu0 %553
  %v555 = vsel %vm86, %v363, 0.0
  %556 = vadd.xlane.f32.xlu0 %v555
  %v557 = vpop.xlane.xlu0 %556
  %v558 = vsel %vm86, %v364, 0.0
  %559 = vadd.xlane.f32.xlu0 %v558
  %v560 = vpop.xlane.xlu0 %559
  %v561 = vsel %vm86, %v365, 0.0
  %562 = vadd.xlane.f32.xlu0 %v561
  %v563 = vpop.xlane.xlu0 %562
  %v564 = vsel %vm86, %v366, 0.0
  %565 = vadd.xlane.f32.xlu0 %v564
  %v566 = vpop.xlane.xlu0 %565
  %v567 = vsel %vm86, %v367, 0.0
  %568 = vadd.xlane.f32.xlu0 %v567
  %v569 = vpop.xlane.xlu0 %568
  %v570 = vsel %vm86, %v368, 0.0
  %571 = vadd.xlane.f32.xlu0 %v570
  %v572 = vpop.xlane.xlu0 %571
  %v573 = vsel %vm86, %v369, 0.0
  %574 = vadd.xlane.f32.xlu0 %v573
  %v575 = vpop.xlane.xlu0 %574
  %v576 = vsel %vm86, %v370, 0.0
  %577 = vadd.xlane.f32.xlu0 %v576
  %v578 = vpop.xlane.xlu0 %577
  %v579 = vsel %vm86, %v371, 0.0
  %580 = vadd.xlane.f32.xlu0 %v579
  %v581 = vpop.xlane.xlu0 %580
  %v582 = vsel %vm86, %v372, 0.0
  %583 = vadd.xlane.f32.xlu0 %v582
  %v584 = vpop.xlane.xlu0 %583
  %v585 = vsel %vm86, %v373, 0.0
  %586 = vadd.xlane.f32.xlu0 %v585
  %v587 = vpop.xlane.xlu0 %586
  %v588 = vsel %vm86, %v374, 0.0
  %589 = vadd.xlane.f32.xlu0 %v588
  %v590 = vpop.xlane.xlu0 %589
  %v591 = vadd.f32 %v89, 0.0
  %v592 = vadd.f32 %v92, 0.0
  %v593 = vadd.f32 %v95, 0.0
  %v594 = vadd.f32 %v98, 0.0
  %v595 = vadd.f32 %v101, 0.0
  %v596 = vadd.f32 %v104, 0.0
  %v597 = vadd.f32 %v107, 0.0
  %v598 = vadd.f32 %v110, 0.0
  %v599 = vadd.f32 %v113, 0.0
  %v600 = vadd.f32 %v116, 0.0
  %v601 = vadd.f32 %v119, 0.0
  %v602 = vadd.f32 %v122, 0.0
  %v603 = vadd.f32 %v125, 0.0
  %v604 = vadd.f32 %v128, 0.0
  %v605 = vadd.f32 %v131, 0.0
  %v606 = vadd.f32 %v134, 0.0
  %v607 = vadd.f32 %v137, 0.0
  %v608 = vadd.f32 %v140, 0.0
  %v609 = vadd.f32 %v143, 0.0
  %v610 = vadd.f32 %v146, 0.0
  %v611 = vadd.f32 %v149, 0.0
  %v612 = vadd.f32 %v152, 0.0
  %v613 = vadd.f32 %v155, 0.0
  %v614 = vadd.f32 %v158, 0.0
  %v615 = vadd.f32 %v161, 0.0
  %v616 = vadd.f32 %v164, 0.0
  %v617 = vadd.f32 %v167, 0.0
  %v618 = vadd.f32 %v170, 0.0
  %v619 = vadd.f32 %v173, 0.0
  %v620 = vadd.f32 %v176, 0.0
  %v621 = vadd.f32 %v179, 0.0
  %v622 = vadd.f32 %v182, 0.0
  %v623 = vadd.f32 %v185, 0.0
  %v624 = vadd.f32 %v188, 0.0
  %v625 = vadd.f32 %v191, 0.0
  %v626 = vadd.f32 %v194, 0.0
  %v627 = vadd.f32 %v197, 0.0
  %v628 = vadd.f32 %v200, 0.0
  %v629 = vadd.f32 %v203, 0.0
  %v630 = vadd.f32 %v206, 0.0
  %v631 = vadd.f32 %v209, 0.0
  %v632 = vadd.f32 %v212, 0.0
  %v633 = vadd.f32 %v215, 0.0
  %v634 = vadd.f32 %v218, 0.0
  %v635 = vadd.f32 %v221, 0.0
  %v636 = vadd.f32 %v224, 0.0
  %v637 = vadd.f32 %v227, 0.0
  %v638 = vadd.f32 %v230, 0.0
  %v639 = vadd.f32 %v233, 0.0
  %v640 = vadd.f32 %v236, 0.0
  %v641 = vadd.f32 %v239, 0.0
  %v642 = vadd.f32 %v242, 0.0
  %v643 = vadd.f32 %v245, 0.0
  %v644 = vadd.f32 %v248, 0.0
  %v645 = vadd.f32 %v251, 0.0
  %v646 = vadd.f32 %v254, 0.0
  %v647 = vadd.f32 %v257, 0.0
  %v648 = vadd.f32 %v260, 0.0
  %v649 = vadd.f32 %v263, 0.0
  %v650 = vadd.f32 %v266, 0.0
  %v651 = vadd.f32 %v269, 0.0
  %v652 = vadd.f32 %v272, 0.0
  %v653 = vadd.f32 %v275, 0.0
  %v654 = vadd.f32 %v278, 0.0
  %v655 = vadd.f32 %v281, 0.0
  %v656 = vadd.f32 %v284, 0.0
  %v657 = vadd.f32 %v287, 0.0
  %v658 = vadd.f32 %v290, 0.0
  %v659 = vadd.f32 %v293, 0.0
  %v660 = vadd.f32 %v296, 0.0
  %v661 = vadd.f32 %v299, 0.0
  %v662 = vadd.f32 %v302, 0.0
  %v663 = vadd.f32 %v377, 0.0
  %v664 = vadd.f32 %v380, 0.0
  %v665 = vadd.f32 %v383, 0.0
  %v666 = vadd.f32 %v386, 0.0
  %v667 = vadd.f32 %v389, 0.0
  %v668 = vadd.f32 %v392, 0.0
  %v669 = vadd.f32 %v395, 0.0
  %v670 = vadd.f32 %v398, 0.0
  %v671 = vadd.f32 %v401, 0.0
  %v672 = vadd.f32 %v404, 0.0
  %v673 = vadd.f32 %v407, 0.0
  %v674 = vadd.f32 %v410, 0.0
  %v675 = vadd.f32 %v413, 0.0
  %v676 = vadd.f32 %v416, 0.0
  %v677 = vadd.f32 %v419, 0.0
  %v678 = vadd.f32 %v422, 0.0
  %v679 = vadd.f32 %v425, 0.0
  %v680 = vadd.f32 %v428, 0.0
  %v681 = vadd.f32 %v431, 0.0
  %v682 = vadd.f32 %v434, 0.0
  %v683 = vadd.f32 %v437, 0.0
  %v684 = vadd.f32 %v440, 0.0
  %v685 = vadd.f32 %v443, 0.0
  %v686 = vadd.f32 %v446, 0.0
  %v687 = vadd.f32 %v449, 0.0
  %v688 = vadd.f32 %v452, 0.0
  %v689 = vadd.f32 %v455, 0.0
  %v690 = vadd.f32 %v458, 0.0
  %v691 = vadd.f32 %v461, 0.0
  %v692 = vadd.f32 %v464, 0.0
  %v693 = vadd.f32 %v467, 0.0
  %v694 = vadd.f32 %v470, 0.0
  %v695 = vadd.f32 %v473, 0.0
  %v696 = vadd.f32 %v476, 0.0
  %v697 = vadd.f32 %v479, 0.0
  %v698 = vadd.f32 %v482, 0.0
  %v699 = vadd.f32 %v485, 0.0
  %v700 = vadd.f32 %v488, 0.0
  %v701 = vadd.f32 %v491, 0.0
  %v702 = vadd.f32 %v494, 0.0
  %v703 = vadd.f32 %v497, 0.0
  %v704 = vadd.f32 %v500, 0.0
  %v705 = vadd.f32 %v503, 0.0
  %v706 = vadd.f32 %v506, 0.0
  %v707 = vadd.f32 %v509, 0.0
  %v708 = vadd.f32 %v512, 0.0
  %v709 = vadd.f32 %v515, 0.0
  %v710 = vadd.f32 %v518, 0.0
  %v711 = vadd.f32 %v521, 0.0
  %v712 = vadd.f32 %v524, 0.0
  %v713 = vadd.f32 %v527, 0.0
  %v714 = vadd.f32 %v530, 0.0
  %v715 = vadd.f32 %v533, 0.0
  %v716 = vadd.f32 %v536, 0.0
  %v717 = vadd.f32 %v539, 0.0
  %v718 = vadd.f32 %v542, 0.0
  %v719 = vadd.f32 %v545, 0.0
  %v720 = vadd.f32 %v548, 0.0
  %v721 = vadd.f32 %v551, 0.0
  %v722 = vadd.f32 %v554, 0.0
  %v723 = vadd.f32 %v557, 0.0
  %v724 = vadd.f32 %v560, 0.0
  %v725 = vadd.f32 %v563, 0.0
  %v726 = vadd.f32 %v566, 0.0
  %v727 = vadd.f32 %v569, 0.0
  %v728 = vadd.f32 %v572, 0.0
  %v729 = vadd.f32 %v575, 0.0
  %v730 = vadd.f32 %v578, 0.0
  %v731 = vadd.f32 %v581, 0.0
  %v732 = vadd.f32 %v584, 0.0
  %v733 = vadd.f32 %v587, 0.0
  %v734 = vadd.f32 %v590, 0.0
  %v735 = vmul.f32 %v591, 0.020408163
  %v736 = vmul.f32 %v592, 0.020408163
  %v737 = vmul.f32 %v593, 0.020408163
  %v738 = vmul.f32 %v594, 0.020408163
  %v739 = vmul.f32 %v595, 0.020408163
  %v740 = vmul.f32 %v596, 0.020408163
  %v741 = vmul.f32 %v597, 0.020408163
  %v742 = vmul.f32 %v598, 0.020408163
  %v743 = vmul.f32 %v599, 0.020408163
  %v744 = vmul.f32 %v600, 0.020408163
  %v745 = vmul.f32 %v601, 0.020408163
  %v746 = vmul.f32 %v602, 0.020408163
  %v747 = vmul.f32 %v603, 0.020408163
  %v748 = vmul.f32 %v604, 0.020408163
  %v749 = vmul.f32 %v605, 0.020408163
  %v750 = vmul.f32 %v606, 0.020408163
  %v751 = vmul.f32 %v607, 0.020408163
  %v752 = vmul.f32 %v608, 0.020408163
  %v753 = vmul.f32 %v609, 0.020408163
  %v754 = vmul.f32 %v610, 0.020408163
  %v755 = vmul.f32 %v611, 0.020408163
  %v756 = vmul.f32 %v612, 0.020408163
  %v757 = vmul.f32 %v613, 0.020408163
  %v758 = vmul.f32 %v614, 0.020408163
  %v759 = vmul.f32 %v615, 0.020408163
  %v760 = vmul.f32 %v616, 0.020408163
  %v761 = vmul.f32 %v617, 0.020408163
  %v762 = vmul.f32 %v618, 0.020408163
  %v763 = vmul.f32 %v619, 0.020408163
  %v764 = vmul.f32 %v620, 0.020408163
  %v765 = vmul.f32 %v621, 0.020408163
  %v766 = vmul.f32 %v622, 0.020408163
  %v767 = vmul.f32 %v623, 0.020408163
  %v768 = vmul.f32 %v624, 0.020408163
  %v769 = vmul.f32 %v625, 0.020408163
  %v770 = vmul.f32 %v626, 0.020408163
  %v771 = vmul.f32 %v627, 0.020408163
  %v772 = vmul.f32 %v628, 0.020408163
  %v773 = vmul.f32 %v629, 0.020408163
  %v774 = vmul.f32 %v630, 0.020408163
  %v775 = vmul.f32 %v631, 0.020408163
  %v776 = vmul.f32 %v632, 0.020408163
  %v777 = vmul.f32 %v633, 0.020408163
  %v778 = vmul.f32 %v634, 0.020408163
  %v779 = vmul.f32 %v635, 0.020408163
  %v780 = vmul.f32 %v636, 0.020408163
  %v781 = vmul.f32 %v637, 0.020408163
  %v782 = vmul.f32 %v638, 0.020408163
  %v783 = vmul.f32 %v639, 0.020408163
  %v784 = vmul.f32 %v640, 0.020408163
  %v785 = vmul.f32 %v641, 0.020408163
  %v786 = vmul.f32 %v642, 0.020408163
  %v787 = vmul.f32 %v643, 0.020408163
  %v788 = vmul.f32 %v644, 0.020408163
  %v789 = vmul.f32 %v645, 0.020408163
  %v790 = vmul.f32 %v646, 0.020408163
  %v791 = vmul.f32 %v647, 0.020408163
  %v792 = vmul.f32 %v648, 0.020408163
  %v793 = vmul.f32 %v649, 0.020408163
  %v794 = vmul.f32 %v650, 0.020408163
  %v795 = vmul.f32 %v651, 0.020408163
  %v796 = vmul.f32 %v652, 0.020408163
  %v797 = vmul.f32 %v653, 0.020408163
  %v798 = vmul.f32 %v654, 0.020408163
  %v799 = vmul.f32 %v655, 0.020408163
  %v800 = vmul.f32 %v656, 0.020408163
  %v801 = vmul.f32 %v657, 0.020408163
  %v802 = vmul.f32 %v658, 0.020408163
  %v803 = vmul.f32 %v659, 0.020408163
  %v804 = vmul.f32 %v660, 0.020408163
  %v805 = vmul.f32 %v661, 0.020408163
  %v806 = vmul.f32 %v662, 0.020408163
  %v807 = vmul.f32 %v663, 0.020408163
  %v808 = vmul.f32 %v664, 0.020408163
  %v809 = vmul.f32 %v665, 0.020408163
  %v810 = vmul.f32 %v666, 0.020408163
  %v811 = vmul.f32 %v667, 0.020408163
  %v812 = vmul.f32 %v668, 0.020408163
  %v813 = vmul.f32 %v669, 0.020408163
  %v814 = vmul.f32 %v670, 0.020408163
  %v815 = vmul.f32 %v671, 0.020408163
  %v816 = vmul.f32 %v672, 0.020408163
  %v817 = vmul.f32 %v673, 0.020408163
  %v818 = vmul.f32 %v674, 0.020408163
  %v819 = vmul.f32 %v675, 0.020408163
  %v820 = vmul.f32 %v676, 0.020408163
  %v821 = vmul.f32 %v677, 0.020408163
  %v822 = vmul.f32 %v678, 0.020408163
  %v823 = vmul.f32 %v679, 0.020408163
  %v824 = vmul.f32 %v680, 0.020408163
  %v825 = vmul.f32 %v681, 0.020408163
  %v826 = vmul.f32 %v682, 0.020408163
  %v827 = vmul.f32 %v683, 0.020408163
  %v828 = vmul.f32 %v684, 0.020408163
  %v829 = vmul.f32 %v685, 0.020408163
  %v830 = vmul.f32 %v686, 0.020408163
  %v831 = vmul.f32 %v687, 0.020408163
  %v832 = vmul.f32 %v688, 0.020408163
  %v833 = vmul.f32 %v689, 0.020408163
  %v834 = vmul.f32 %v690, 0.020408163
  %v835 = vmul.f32 %v691, 0.020408163
  %v836 = vmul.f32 %v692, 0.020408163
  %v837 = vmul.f32 %v693, 0.020408163
  %v838 = vmul.f32 %v694, 0.020408163
  %v839 = vmul.f32 %v695, 0.020408163
  %v840 = vmul.f32 %v696, 0.020408163
  %v841 = vmul.f32 %v697, 0.020408163
  %v842 = vmul.f32 %v698, 0.020408163
  %v843 = vmul.f32 %v699, 0.020408163
  %v844 = vmul.f32 %v700, 0.020408163
  %v845 = vmul.f32 %v701, 0.020408163
  %v846 = vmul.f32 %v702, 0.020408163
  %v847 = vmul.f32 %v703, 0.020408163
  %v848 = vmul.f32 %v704, 0.020408163
  %v849 = vmul.f32 %v705, 0.020408163
  %v850 = vmul.f32 %v706, 0.020408163
  %v851 = vmul.f32 %v707, 0.020408163
  %v852 = vmul.f32 %v708, 0.020408163
  %v853 = vmul.f32 %v709, 0.020408163
  %v854 = vmul.f32 %v710, 0.020408163
  %v855 = vmul.f32 %v711, 0.020408163
  %v856 = vmul.f32 %v712, 0.020408163
  %v857 = vmul.f32 %v713, 0.020408163
  %v858 = vmul.f32 %v714, 0.020408163
  %v859 = vmul.f32 %v715, 0.020408163
  %v860 = vmul.f32 %v716, 0.020408163
  %v861 = vmul.f32 %v717, 0.020408163
  %v862 = vmul.f32 %v718, 0.020408163
  %v863 = vmul.f32 %v719, 0.020408163
  %v864 = vmul.f32 %v720, 0.020408163
  %v865 = vmul.f32 %v721, 0.020408163
  %v866 = vmul.f32 %v722, 0.020408163
  %v867 = vmul.f32 %v723, 0.020408163
  %v868 = vmul.f32 %v724, 0.020408163
  %v869 = vmul.f32 %v725, 0.020408163
  %v870 = vmul.f32 %v726, 0.020408163
  %v871 = vmul.f32 %v727, 0.020408163
  %v872 = vmul.f32 %v728, 0.020408163
  %v873 = vmul.f32 %v729, 0.020408163
  %v874 = vmul.f32 %v730, 0.020408163
  %v875 = vmul.f32 %v731, 0.020408163
  %v876 = vmul.f32 %v732, 0.020408163
  %v877 = vmul.f32 %v733, 0.020408163
  %v878 = vmul.f32 %v734, 0.020408163
  %v879 = vmul.f32 %v735, %v735
  %v880 = vmul.f32 %v736, %v736
  %v881 = vmul.f32 %v737, %v737
  %v882 = vmul.f32 %v738, %v738
  %v883 = vmul.f32 %v739, %v739
  %v884 = vmul.f32 %v740, %v740
  %v885 = vmul.f32 %v741, %v741
  %v886 = vmul.f32 %v742, %v742
  %v887 = vmul.f32 %v743, %v743
  %v888 = vmul.f32 %v744, %v744
  %v889 = vmul.f32 %v745, %v745
  %v890 = vmul.f32 %v746, %v746
  %v891 = vmul.f32 %v747, %v747
  %v892 = vmul.f32 %v748, %v748
  %v893 = vmul.f32 %v749, %v749
  %v894 = vmul.f32 %v750, %v750
  %v895 = vmul.f32 %v751, %v751
  %v896 = vmul.f32 %v752, %v752
  %v897 = vmul.f32 %v753, %v753
  %v898 = vmul.f32 %v754, %v754
  %v899 = vmul.f32 %v755, %v755
  %v900 = vmul.f32 %v756, %v756
  %v901 = vmul.f32 %v757, %v757
  %v902 = vmul.f32 %v758, %v758
  %v903 = vmul.f32 %v759, %v759
  %v904 = vmul.f32 %v760, %v760
  %v905 = vmul.f32 %v761, %v761
  %v906 = vmul.f32 %v762, %v762
  %v907 = vmul.f32 %v763, %v763
  %v908 = vmul.f32 %v764, %v764
  %v909 = vmul.f32 %v765, %v765
  %v910 = vmul.f32 %v766, %v766
  %v911 = vmul.f32 %v767, %v767
  %v912 = vmul.f32 %v768, %v768
  %v913 = vmul.f32 %v769, %v769
  %v914 = vmul.f32 %v770, %v770
  %v915 = vmul.f32 %v771, %v771
  %v916 = vmul.f32 %v772, %v772
  %v917 = vmul.f32 %v773, %v773
  %v918 = vmul.f32 %v774, %v774
  %v919 = vmul.f32 %v775, %v775
  %v920 = vmul.f32 %v776, %v776
  %v921 = vmul.f32 %v777, %v777
  %v922 = vmul.f32 %v778, %v778
  %v923 = vmul.f32 %v779, %v779
  %v924 = vmul.f32 %v780, %v780
  %v925 = vmul.f32 %v781, %v781
  %v926 = vmul.f32 %v782, %v782
  %v927 = vmul.f32 %v783, %v783
  %v928 = vmul.f32 %v784, %v784
  %v929 = vmul.f32 %v785, %v785
  %v930 = vmul.f32 %v786, %v786
  %v931 = vmul.f32 %v787, %v787
  %v932 = vmul.f32 %v788, %v788
  %v933 = vmul.f32 %v789, %v789
  %v934 = vmul.f32 %v790, %v790
  %v935 = vmul.f32 %v791, %v791
  %v936 = vmul.f32 %v792, %v792
  %v937 = vmul.f32 %v793, %v793
  %v938 = vmul.f32 %v794, %v794
  %v939 = vmul.f32 %v795, %v795
  %v940 = vmul.f32 %v796, %v796
  %v941 = vmul.f32 %v797, %v797
  %v942 = vmul.f32 %v798, %v798
  %v943 = vmul.f32 %v799, %v799
  %v944 = vmul.f32 %v800, %v800
  %v945 = vmul.f32 %v801, %v801
  %v946 = vmul.f32 %v802, %v802
  %v947 = vmul.f32 %v803, %v803
  %v948 = vmul.f32 %v804, %v804
  %v949 = vmul.f32 %v805, %v805
  %v950 = vmul.f32 %v806, %v806
  %v951 = vsub.f32 %v807, %v879
  %v952 = vsub.f32 %v808, %v880
  %v953 = vsub.f32 %v809, %v881
  %v954 = vsub.f32 %v810, %v882
  %v955 = vsub.f32 %v811, %v883
  %v956 = vsub.f32 %v812, %v884
  %v957 = vsub.f32 %v813, %v885
  %v958 = vsub.f32 %v814, %v886
  %v959 = vsub.f32 %v815, %v887
  %v960 = vsub.f32 %v816, %v888
  %v961 = vsub.f32 %v817, %v889
  %v962 = vsub.f32 %v818, %v890
  %v963 = vsub.f32 %v819, %v891
  %v964 = vsub.f32 %v820, %v892
  %v965 = vsub.f32 %v821, %v893
  %v966 = vsub.f32 %v822, %v894
  %v967 = vsub.f32 %v823, %v895
  %v968 = vsub.f32 %v824, %v896
  %v969 = vsub.f32 %v825, %v897
  %v970 = vsub.f32 %v826, %v898
  %v971 = vsub.f32 %v827, %v899
  %v972 = vsub.f32 %v828, %v900
  %v973 = vsub.f32 %v829, %v901
  %v974 = vsub.f32 %v830, %v902
  %v975 = vsub.f32 %v831, %v903
  %v976 = vsub.f32 %v832, %v904
  %v977 = vsub.f32 %v833, %v905
  %v978 = vsub.f32 %v834, %v906
  %v979 = vsub.f32 %v835, %v907
  %v980 = vsub.f32 %v836, %v908
  %v981 = vsub.f32 %v837, %v909
  %v982 = vsub.f32 %v838, %v910
  %v983 = vsub.f32 %v839, %v911
  %v984 = vsub.f32 %v840, %v912
  %v985 = vsub.f32 %v841, %v913
  %v986 = vsub.f32 %v842, %v914
  %v987 = vsub.f32 %v843, %v915
  %v988 = vsub.f32 %v844, %v916
  %v989 = vsub.f32 %v845, %v917
  %v990 = vsub.f32 %v846, %v918
  %v991 = vsub.f32 %v847, %v919
  %v992 = vsub.f32 %v848, %v920
  %v993 = vsub.f32 %v849, %v921
  %v994 = vsub.f32 %v850, %v922
  %v995 = vsub.f32 %v851, %v923
  %v996 = vsub.f32 %v852, %v924
  %v997 = vsub.f32 %v853, %v925
  %v998 = vsub.f32 %v854, %v926
  %v999 = vsub.f32 %v855, %v927
  %v1000 = vsub.f32 %v856, %v928
  %v1001 = vsub.f32 %v857, %v929
  %v1002 = vsub.f32 %v858, %v930
  %v1003 = vsub.f32 %v859, %v931
  %v1004 = vsub.f32 %v860, %v932
  %v1005 = vsub.f32 %v861, %v933
  %v1006 = vsub.f32 %v862, %v934
  %v1007 = vsub.f32 %v863, %v935
  %v1008 = vsub.f32 %v864, %v936
  %v1009 = vsub.f32 %v865, %v937
  %v1010 = vsub.f32 %v866, %v938
  %v1011 = vsub.f32 %v867, %v939
  %v1012 = vsub.f32 %v868, %v940
  %v1013 = vsub.f32 %v869, %v941
  %v1014 = vsub.f32 %v870, %v942
  %v1015 = vsub.f32 %v871, %v943
  %v1016 = vsub.f32 %v872, %v944
  %v1017 = vsub.f32 %v873, %v945
  %v1018 = vsub.f32 %v874, %v946
  %v1019 = vsub.f32 %v875, %v947
  %v1020 = vsub.f32 %v876, %v948
  %v1021 = vsub.f32 %v877, %v949
  %v1022 = vsub.f32 %v878, %v950
  %v1023 = vmax.f32 %v951, 0.0
  %v1024 = vmax.f32 %v952, 0.0
  %v1025 = vmax.f32 %v953, 0.0
  %v1026 = vmax.f32 %v954, 0.0
  %v1027 = vmax.f32 %v955, 0.0
  %v1028 = vmax.f32 %v956, 0.0
  %v1029 = vmax.f32 %v957, 0.0
  %v1030 = vmax.f32 %v958, 0.0
  %v1031 = vmax.f32 %v959, 0.0
  %v1032 = vmax.f32 %v960, 0.0
  %v1033 = vmax.f32 %v961, 0.0
  %v1034 = vmax.f32 %v962, 0.0
  %v1035 = vmax.f32 %v963, 0.0
  %v1036 = vmax.f32 %v964, 0.0
  %v1037 = vmax.f32 %v965, 0.0
  %v1038 = vmax.f32 %v966, 0.0
  %v1039 = vmax.f32 %v967, 0.0
  %v1040 = vmax.f32 %v968, 0.0
  %v1041 = vmax.f32 %v969, 0.0
  %v1042 = vmax.f32 %v970, 0.0
  %v1043 = vmax.f32 %v971, 0.0
  %v1044 = vmax.f32 %v972, 0.0
  %v1045 = vmax.f32 %v973, 0.0
  %v1046 = vmax.f32 %v974, 0.0
  %v1047 = vmax.f32 %v975, 0.0
  %v1048 = vmax.f32 %v976, 0.0
  %v1049 = vmax.f32 %v977, 0.0
  %v1050 = vmax.f32 %v978, 0.0
  %v1051 = vmax.f32 %v979, 0.0
  %v1052 = vmax.f32 %v980, 0.0
  %v1053 = vmax.f32 %v981, 0.0
  %v1054 = vmax.f32 %v982, 0.0
  %v1055 = vmax.f32 %v983, 0.0
  %v1056 = vmax.f32 %v984, 0.0
  %v1057 = vmax.f32 %v985, 0.0
  %v1058 = vmax.f32 %v986, 0.0
  %v1059 = vmax.f32 %v987, 0.0
  %v1060 = vmax.f32 %v988, 0.0
  %v1061 = vmax.f32 %v989, 0.0
  %v1062 = vmax.f32 %v990, 0.0
  %v1063 = vmax.f32 %v991, 0.0
  %v1064 = vmax.f32 %v992, 0.0
  %v1065 = vmax.f32 %v993, 0.0
  %v1066 = vmax.f32 %v994, 0.0
  %v1067 = vmax.f32 %v995, 0.0
  %v1068 = vmax.f32 %v996, 0.0
  %v1069 = vmax.f32 %v997, 0.0
  %v1070 = vmax.f32 %v998, 0.0
  %v1071 = vmax.f32 %v999, 0.0
  %v1072 = vmax.f32 %v1000, 0.0
  %v1073 = vmax.f32 %v1001, 0.0
  %v1074 = vmax.f32 %v1002, 0.0
  %v1075 = vmax.f32 %v1003, 0.0
  %v1076 = vmax.f32 %v1004, 0.0
  %v1077 = vmax.f32 %v1005, 0.0
  %v1078 = vmax.f32 %v1006, 0.0
  %v1079 = vmax.f32 %v1007, 0.0
  %v1080 = vmax.f32 %v1008, 0.0
  %v1081 = vmax.f32 %v1009, 0.0
  %v1082 = vmax.f32 %v1010, 0.0
  %v1083 = vmax.f32 %v1011, 0.0
  %v1084 = vmax.f32 %v1012, 0.0
  %v1085 = vmax.f32 %v1013, 0.0
  %v1086 = vmax.f32 %v1014, 0.0
  %v1087 = vmax.f32 %v1015, 0.0
  %v1088 = vmax.f32 %v1016, 0.0
  %v1089 = vmax.f32 %v1017, 0.0
  %v1090 = vmax.f32 %v1018, 0.0
  %v1091 = vmax.f32 %v1019, 0.0
  %v1092 = vmax.f32 %v1020, 0.0
  %v1093 = vmax.f32 %v1021, 0.0
  %v1094 = vmax.f32 %v1022, 0.0
  %v1095 = vadd.f32 %v1023, 1e-05
  %v1096 = vadd.f32 %v1024, 1e-05
  %v1097 = vadd.f32 %v1025, 1e-05
  %v1098 = vadd.f32 %v1026, 1e-05
  %v1099 = vadd.f32 %v1027, 1e-05
  %v1100 = vadd.f32 %v1028, 1e-05
  %v1101 = vadd.f32 %v1029, 1e-05
  %v1102 = vadd.f32 %v1030, 1e-05
  %v1103 = vadd.f32 %v1031, 1e-05
  %v1104 = vadd.f32 %v1032, 1e-05
  %v1105 = vadd.f32 %v1033, 1e-05
  %v1106 = vadd.f32 %v1034, 1e-05
  %v1107 = vadd.f32 %v1035, 1e-05
  %v1108 = vadd.f32 %v1036, 1e-05
  %v1109 = vadd.f32 %v1037, 1e-05
  %v1110 = vadd.f32 %v1038, 1e-05
  %v1111 = vadd.f32 %v1039, 1e-05
  %v1112 = vadd.f32 %v1040, 1e-05
  %v1113 = vadd.f32 %v1041, 1e-05
  %v1114 = vadd.f32 %v1042, 1e-05
  %v1115 = vadd.f32 %v1043, 1e-05
  %v1116 = vadd.f32 %v1044, 1e-05
  %v1117 = vadd.f32 %v1045, 1e-05
  %v1118 = vadd.f32 %v1046, 1e-05
  %v1119 = vadd.f32 %v1047, 1e-05
  %v1120 = vadd.f32 %v1048, 1e-05
  %v1121 = vadd.f32 %v1049, 1e-05
  %v1122 = vadd.f32 %v1050, 1e-05
  %v1123 = vadd.f32 %v1051, 1e-05
  %v1124 = vadd.f32 %v1052, 1e-05
  %v1125 = vadd.f32 %v1053, 1e-05
  %v1126 = vadd.f32 %v1054, 1e-05
  %v1127 = vadd.f32 %v1055, 1e-05
  %v1128 = vadd.f32 %v1056, 1e-05
  %v1129 = vadd.f32 %v1057, 1e-05
  %v1130 = vadd.f32 %v1058, 1e-05
  %v1131 = vadd.f32 %v1059, 1e-05
  %v1132 = vadd.f32 %v1060, 1e-05
  %v1133 = vadd.f32 %v1061, 1e-05
  %v1134 = vadd.f32 %v1062, 1e-05
  %v1135 = vadd.f32 %v1063, 1e-05
  %v1136 = vadd.f32 %v1064, 1e-05
  %v1137 = vadd.f32 %v1065, 1e-05
  %v1138 = vadd.f32 %v1066, 1e-05
  %v1139 = vadd.f32 %v1067, 1e-05
  %v1140 = vadd.f32 %v1068, 1e-05
  %v1141 = vadd.f32 %v1069, 1e-05
  %v1142 = vadd.f32 %v1070, 1e-05
  %v1143 = vadd.f32 %v1071, 1e-05
  %v1144 = vadd.f32 %v1072, 1e-05
  %v1145 = vadd.f32 %v1073, 1e-05
  %v1146 = vadd.f32 %v1074, 1e-05
  %v1147 = vadd.f32 %v1075, 1e-05
  %v1148 = vadd.f32 %v1076, 1e-05
  %v1149 = vadd.f32 %v1077, 1e-05
  %v1150 = vadd.f32 %v1078, 1e-05
  %v1151 = vadd.f32 %v1079, 1e-05
  %v1152 = vadd.f32 %v1080, 1e-05
  %v1153 = vadd.f32 %v1081, 1e-05
  %v1154 = vadd.f32 %v1082, 1e-05
  %v1155 = vadd.f32 %v1083, 1e-05
  %v1156 = vadd.f32 %v1084, 1e-05
  %v1157 = vadd.f32 %v1085, 1e-05
  %v1158 = vadd.f32 %v1086, 1e-05
  %v1159 = vadd.f32 %v1087, 1e-05
  %v1160 = vadd.f32 %v1088, 1e-05
  %v1161 = vadd.f32 %v1089, 1e-05
  %v1162 = vadd.f32 %v1090, 1e-05
  %v1163 = vadd.f32 %v1091, 1e-05
  %v1164 = vadd.f32 %v1092, 1e-05
  %v1165 = vadd.f32 %v1093, 1e-05
  %v1166 = vadd.f32 %v1094, 1e-05
  %v1167 = vrsqrt.pop %v1095
  %v1168 = vrsqrt.pop %v1096
  %v1169 = vrsqrt.pop %v1097
  %v1170 = vrsqrt.pop %v1098
  %v1171 = vrsqrt.pop %v1099
  %v1172 = vrsqrt.pop %v1100
  %v1173 = vrsqrt.pop %v1101
  %v1174 = vrsqrt.pop %v1102
  %v1175 = vrsqrt.pop %v1103
  %v1176 = vrsqrt.pop %v1104
  %v1177 = vrsqrt.pop %v1105
  %v1178 = vrsqrt.pop %v1106
  %v1179 = vrsqrt.pop %v1107
  %v1180 = vrsqrt.pop %v1108
  %v1181 = vrsqrt.pop %v1109
  %v1182 = vrsqrt.pop %v1110
  %v1183 = vrsqrt.pop %v1111
  %v1184 = vrsqrt.pop %v1112
  %v1185 = vrsqrt.pop %v1113
  %v1186 = vrsqrt.pop %v1114
  %v1187 = vrsqrt.pop %v1115
  %v1188 = vrsqrt.pop %v1116
  %v1189 = vrsqrt.pop %v1117
  %v1190 = vrsqrt.pop %v1118
  %v1191 = vrsqrt.pop %v1119
  %v1192 = vrsqrt.pop %v1120
  %v1193 = vrsqrt.pop %v1121
  %v1194 = vrsqrt.pop %v1122
  %v1195 = vrsqrt.pop %v1123
  %v1196 = vrsqrt.pop %v1124
  %v1197 = vrsqrt.pop %v1125
  %v1198 = vrsqrt.pop %v1126
  %v1199 = vrsqrt.pop %v1127
  %v1200 = vrsqrt.pop %v1128
  %v1201 = vrsqrt.pop %v1129
  %v1202 = vrsqrt.pop %v1130
  %v1203 = vrsqrt.pop %v1131
  %v1204 = vrsqrt.pop %v1132
  %v1205 = vrsqrt.pop %v1133
  %v1206 = vrsqrt.pop %v1134
  %v1207 = vrsqrt.pop %v1135
  %v1208 = vrsqrt.pop %v1136
  %v1209 = vrsqrt.pop %v1137
  %v1210 = vrsqrt.pop %v1138
  %v1211 = vrsqrt.pop %v1139
  %v1212 = vrsqrt.pop %v1140
  %v1213 = vrsqrt.pop %v1141
  %v1214 = vrsqrt.pop %v1142
  %v1215 = vrsqrt.pop %v1143
  %v1216 = vrsqrt.pop %v1144
  %v1217 = vrsqrt.pop %v1145
  %v1218 = vrsqrt.pop %v1146
  %v1219 = vrsqrt.pop %v1147
  %v1220 = vrsqrt.pop %v1148
  %v1221 = vrsqrt.pop %v1149
  %v1222 = vrsqrt.pop %v1150
  %v1223 = vrsqrt.pop %v1151
  %v1224 = vrsqrt.pop %v1152
  %v1225 = vrsqrt.pop %v1153
  %v1226 = vrsqrt.pop %v1154
  %v1227 = vrsqrt.pop %v1155
  %v1228 = vrsqrt.pop %v1156
  %v1229 = vrsqrt.pop %v1157
  %v1230 = vrsqrt.pop %v1158
  %v1231 = vrsqrt.pop %v1159
  %v1232 = vrsqrt.pop %v1160
  %v1233 = vrsqrt.pop %v1161
  %v1234 = vrsqrt.pop %v1162
  %v1235 = vrsqrt.pop %v1163
  %v1236 = vrsqrt.pop %v1164
  %v1237 = vrsqrt.pop %v1165
  %v1238 = vrsqrt.pop %v1166
  %v1239 = vld [vmem:[%s1] sm:$0xff]
  %v1240 = vld [vmem:[%s1 + $0x8] sm:$0xff]
  %v1241 = vld [vmem:[%s1 + $0x10] sm:$0xff]
  %v1242 = vld [vmem:[%s1 + $0x18] sm:$0xff]
  %v1243 = vld [vmem:[%s1 + $0x20] sm:$0xff]
  %v1244 = vld [vmem:[%s1 + $0x28] sm:$0xff]
  %v1245 = vld [vmem:[%s1 + $0x30] sm:$0xff]
  %v1246 = vld [vmem:[%s1 + $0x38] sm:$0xff]
  %v1247 = vld [vmem:[%s1 + $0x40] sm:$0xff]
  %v1248 = vld [vmem:[%s1 + $0x48] sm:$0xff]
  %v1249 = vld [vmem:[%s1 + $0x50] sm:$0xff]
  %v1250 = vld [vmem:[%s1 + $0x58] sm:$0xff]
  %v1251 = vld [vmem:[%s1 + $0x60] sm:$0xff]
  %v1252 = vld [vmem:[%s1 + $0x68] sm:$0xff]
  %v1253 = vld [vmem:[%s1 + $0x70] sm:$0xff]
  %v1254 = vld [vmem:[%s1 + $0x78] sm:$0xff]
  %v1255 = vld [vmem:[%s1 + $0x80] sm:$0xff]
  %v1256 = vld [vmem:[%s1 + $0x88] sm:$0xff]
  %v1257 = vld [vmem:[%s1 + $0x90] sm:$0xff]
  %v1258 = vld [vmem:[%s1 + $0x98] sm:$0xff]
  %v1259 = vld [vmem:[%s1 + $0xa0] sm:$0xff]
  %v1260 = vld [vmem:[%s1 + $0xa8] sm:$0xff]
  %v1261 = vld [vmem:[%s1 + $0xb0] sm:$0xff]
  %v1262 = vld [vmem:[%s1 + $0xb8] sm:$0xff]
  %v1263 = vld [vmem:[%s1 + $0xc0] sm:$0xff]
  %v1264 = vld [vmem:[%s1 + $0xc8] sm:$0xff]
  %v1265 = vld [vmem:[%s1 + $0xd0] sm:$0xff]
  %v1266 = vld [vmem:[%s1 + $0xd8] sm:$0xff]
  %v1267 = vld [vmem:[%s1 + $0xe0] sm:$0xff]
  %v1268 = vld [vmem:[%s1 + $0xe8] sm:$0xff]
  %v1269 = vld [vmem:[%s1 + $0xf0] sm:$0xff]
  %v1270 = vld [vmem:[%s1 + $0xf8] sm:$0xff]
  %v1271 = vld [vmem:[%s1 + $0x100] sm:$0xff]
  %v1272 = vld [vmem:[%s1 + $0x108] sm:$0xff]
  %v1273 = vld [vmem:[%s1 + $0x110] sm:$0xff]
  %v1274 = vld [vmem:[%s1 + $0x118] sm:$0xff]
  %v1275 = vld [vmem:[%s1 + $0x120] sm:$0xff]
  %v1276 = vld [vmem:[%s1 + $0x128] sm:$0xff]
  %v1277 = vld [vmem:[%s1 + $0x130] sm:$0xff]
  %v1278 = vld [vmem:[%s1 + $0x138] sm:$0xff]
  %v1279 = vld [vmem:[%s1 + $0x140] sm:$0xff]
  %v1280 = vld [vmem:[%s1 + $0x148] sm:$0xff]
  %v1281 = vld [vmem:[%s1 + $0x150] sm:$0xff]
  %v1282 = vld [vmem:[%s1 + $0x158] sm:$0xff]
  %v1283 = vld [vmem:[%s1 + $0x160] sm:$0xff]
  %v1284 = vld [vmem:[%s1 + $0x168] sm:$0xff]
  %v1285 = vld [vmem:[%s1 + $0x170] sm:$0xff]
  %v1286 = vld [vmem:[%s1 + $0x178] sm:$0xff]
  %v1287 = vld [vmem:[%s1 + $0x180] sm:$0xff]
  %v1288 = vld [vmem:[%s1 + $0x188] sm:$0xff]
  %v1289 = vld [vmem:[%s1 + $0x190] sm:$0xff]
  %v1290 = vld [vmem:[%s1 + $0x198] sm:$0xff]
  %v1291 = vld [vmem:[%s1 + $0x1a0] sm:$0xff]
  %v1292 = vld [vmem:[%s1 + $0x1a8] sm:$0xff]
  %v1293 = vld [vmem:[%s1 + $0x1b0] sm:$0xff]
  %v1294 = vld [vmem:[%s1 + $0x1b8] sm:$0xff]
  %v1295 = vld [vmem:[%s1 + $0x1c0] sm:$0xff]
  %v1296 = vld [vmem:[%s1 + $0x1c8] sm:$0xff]
  %v1297 = vld [vmem:[%s1 + $0x1d0] sm:$0xff]
  %v1298 = vld [vmem:[%s1 + $0x1d8] sm:$0xff]
  %v1299 = vld [vmem:[%s1 + $0x1e0] sm:$0xff]
  %v1300 = vld [vmem:[%s1 + $0x1e8] sm:$0xff]
  %v1301 = vld [vmem:[%s1 + $0x1f0] sm:$0xff]
  %v1302 = vld [vmem:[%s1 + $0x1f8] sm:$0xff]
  %v1303 = vld [vmem:[%s1 + $0x200] sm:$0xff]
  %v1304 = vld [vmem:[%s1 + $0x208] sm:$0xff]
  %v1305 = vld [vmem:[%s1 + $0x210] sm:$0xff]
  %v1306 = vld [vmem:[%s1 + $0x218] sm:$0xff]
  %v1307 = vld [vmem:[%s1 + $0x220] sm:$0xff]
  %v1308 = vld [vmem:[%s1 + $0x228] sm:$0xff]
  %v1309 = vld [vmem:[%s1 + $0x230] sm:$0xff]
  %v1310 = vld [vmem:[%s1 + $0x238] sm:$0xff]
  %v1311 = vmul.f32 %v1239, %v1167
  %v1312 = vmul.f32 %v1240, %v1168
  %v1313 = vmul.f32 %v1241, %v1169
  %v1314 = vmul.f32 %v1242, %v1170
  %v1315 = vmul.f32 %v1243, %v1171
  %v1316 = vmul.f32 %v1244, %v1172
  %v1317 = vmul.f32 %v1245, %v1173
  %v1318 = vmul.f32 %v1246, %v1174
  %v1319 = vmul.f32 %v1247, %v1175
  %v1320 = vmul.f32 %v1248, %v1176
  %v1321 = vmul.f32 %v1249, %v1177
  %v1322 = vmul.f32 %v1250, %v1178
  %v1323 = vmul.f32 %v1251, %v1179
  %v1324 = vmul.f32 %v1252, %v1180
  %v1325 = vmul.f32 %v1253, %v1181
  %v1326 = vmul.f32 %v1254, %v1182
  %v1327 = vmul.f32 %v1255, %v1183
  %v1328 = vmul.f32 %v1256, %v1184
  %v1329 = vmul.f32 %v1257, %v1185
  %v1330 = vmul.f32 %v1258, %v1186
  %v1331 = vmul.f32 %v1259, %v1187
  %v1332 = vmul.f32 %v1260, %v1188
  %v1333 = vmul.f32 %v1261, %v1189
  %v1334 = vmul.f32 %v1262, %v1190
  %v1335 = vmul.f32 %v1263, %v1191
  %v1336 = vmul.f32 %v1264, %v1192
  %v1337 = vmul.f32 %v1265, %v1193
  %v1338 = vmul.f32 %v1266, %v1194
  %v1339 = vmul.f32 %v1267, %v1195
  %v1340 = vmul.f32 %v1268, %v1196
  %v1341 = vmul.f32 %v1269, %v1197
  %v1342 = vmul.f32 %v1270, %v1198
  %v1343 = vmul.f32 %v1271, %v1199
  %v1344 = vmul.f32 %v1272, %v1200
  %v1345 = vmul.f32 %v1273, %v1201
  %v1346 = vmul.f32 %v1274, %v1202
  %v1347 = vmul.f32 %v1275, %v1203
  %v1348 = vmul.f32 %v1276, %v1204
  %v1349 = vmul.f32 %v1277, %v1205
  %v1350 = vmul.f32 %v1278, %v1206
  %v1351 = vmul.f32 %v1279, %v1207
  %v1352 = vmul.f32 %v1280, %v1208
  %v1353 = vmul.f32 %v1281, %v1209
  %v1354 = vmul.f32 %v1282, %v1210
  %v1355 = vmul.f32 %v1283, %v1211
  %v1356 = vmul.f32 %v1284, %v1212
  %v1357 = vmul.f32 %v1285, %v1213
  %v1358 = vmul.f32 %v1286, %v1214
  %v1359 = vmul.f32 %v1287, %v1215
  %v1360 = vmul.f32 %v1288, %v1216
  %v1361 = vmul.f32 %v1289, %v1217
  %v1362 = vmul.f32 %v1290, %v1218
  %v1363 = vmul.f32 %v1291, %v1219
  %v1364 = vmul.f32 %v1292, %v1220
  %v1365 = vmul.f32 %v1293, %v1221
  %v1366 = vmul.f32 %v1294, %v1222
  %v1367 = vmul.f32 %v1295, %v1223
  %v1368 = vmul.f32 %v1296, %v1224
  %v1369 = vmul.f32 %v1297, %v1225
  %v1370 = vmul.f32 %v1298, %v1226
  %v1371 = vmul.f32 %v1299, %v1227
  %v1372 = vmul.f32 %v1300, %v1228
  %v1373 = vmul.f32 %v1301, %v1229
  %v1374 = vmul.f32 %v1302, %v1230
  %v1375 = vmul.f32 %v1303, %v1231
  %v1376 = vmul.f32 %v1304, %v1232
  %v1377 = vmul.f32 %v1305, %v1233
  %v1378 = vmul.f32 %v1306, %v1234
  %v1379 = vmul.f32 %v1307, %v1235
  %v1380 = vmul.f32 %v1308, %v1236
  %v1381 = vmul.f32 %v1309, %v1237
  %v1382 = vmul.f32 %v1310, %v1238
  %v1383 = vld [vmem:[%s2] sm:$0xff]
  %v1384 = vld [vmem:[%s2 + $0x8] sm:$0xff]
  %v1385 = vld [vmem:[%s2 + $0x10] sm:$0xff]
  %v1386 = vld [vmem:[%s2 + $0x18] sm:$0xff]
  %v1387 = vld [vmem:[%s2 + $0x20] sm:$0xff]
  %v1388 = vld [vmem:[%s2 + $0x28] sm:$0xff]
  %v1389 = vld [vmem:[%s2 + $0x30] sm:$0xff]
  %v1390 = vld [vmem:[%s2 + $0x38] sm:$0xff]
  %v1391 = vld [vmem:[%s2 + $0x40] sm:$0xff]
  %v1392 = vld [vmem:[%s2 + $0x48] sm:$0xff]
  %v1393 = vld [vmem:[%s2 + $0x50] sm:$0xff]
  %v1394 = vld [vmem:[%s2 + $0x58] sm:$0xff]
  %v1395 = vld [vmem:[%s2 + $0x60] sm:$0xff]
  %v1396 = vld [vmem:[%s2 + $0x68] sm:$0xff]
  %v1397 = vld [vmem:[%s2 + $0x70] sm:$0xff]
  %v1398 = vld [vmem:[%s2 + $0x78] sm:$0xff]
  %v1399 = vld [vmem:[%s2 + $0x80] sm:$0xff]
  %v1400 = vld [vmem:[%s2 + $0x88] sm:$0xff]
  %v1401 = vld [vmem:[%s2 + $0x90] sm:$0xff]
  %v1402 = vld [vmem:[%s2 + $0x98] sm:$0xff]
  %v1403 = vld [vmem:[%s2 + $0xa0] sm:$0xff]
  %v1404 = vld [vmem:[%s2 + $0xa8] sm:$0xff]
  %v1405 = vld [vmem:[%s2 + $0xb0] sm:$0xff]
  %v1406 = vld [vmem:[%s2 + $0xb8] sm:$0xff]
  %v1407 = vld [vmem:[%s2 + $0xc0] sm:$0xff]
  %v1408 = vld [vmem:[%s2 + $0xc8] sm:$0xff]
  %v1409 = vld [vmem:[%s2 + $0xd0] sm:$0xff]
  %v1410 = vld [vmem:[%s2 + $0xd8] sm:$0xff]
  %v1411 = vld [vmem:[%s2 + $0xe0] sm:$0xff]
  %v1412 = vld [vmem:[%s2 + $0xe8] sm:$0xff]
  %v1413 = vld [vmem:[%s2 + $0xf0] sm:$0xff]
  %v1414 = vld [vmem:[%s2 + $0xf8] sm:$0xff]
  %v1415 = vld [vmem:[%s2 + $0x100] sm:$0xff]
  %v1416 = vld [vmem:[%s2 + $0x108] sm:$0xff]
  %v1417 = vld [vmem:[%s2 + $0x110] sm:$0xff]
  %v1418 = vld [vmem:[%s2 + $0x118] sm:$0xff]
  %v1419 = vld [vmem:[%s2 + $0x120] sm:$0xff]
  %v1420 = vld [vmem:[%s2 + $0x128] sm:$0xff]
  %v1421 = vld [vmem:[%s2 + $0x130] sm:$0xff]
  %v1422 = vld [vmem:[%s2 + $0x138] sm:$0xff]
  %v1423 = vld [vmem:[%s2 + $0x140] sm:$0xff]
  %v1424 = vld [vmem:[%s2 + $0x148] sm:$0xff]
  %v1425 = vld [vmem:[%s2 + $0x150] sm:$0xff]
  %v1426 = vld [vmem:[%s2 + $0x158] sm:$0xff]
  %v1427 = vld [vmem:[%s2 + $0x160] sm:$0xff]
  %v1428 = vld [vmem:[%s2 + $0x168] sm:$0xff]
  %v1429 = vld [vmem:[%s2 + $0x170] sm:$0xff]
  %v1430 = vld [vmem:[%s2 + $0x178] sm:$0xff]
  %v1431 = vld [vmem:[%s2 + $0x180] sm:$0xff]
  %v1432 = vld [vmem:[%s2 + $0x188] sm:$0xff]
  %v1433 = vld [vmem:[%s2 + $0x190] sm:$0xff]
  %v1434 = vld [vmem:[%s2 + $0x198] sm:$0xff]
  %v1435 = vld [vmem:[%s2 + $0x1a0] sm:$0xff]
  %v1436 = vld [vmem:[%s2 + $0x1a8] sm:$0xff]
  %v1437 = vld [vmem:[%s2 + $0x1b0] sm:$0xff]
  %v1438 = vld [vmem:[%s2 + $0x1b8] sm:$0xff]
  %v1439 = vld [vmem:[%s2 + $0x1c0] sm:$0xff]
  %v1440 = vld [vmem:[%s2 + $0x1c8] sm:$0xff]
  %v1441 = vld [vmem:[%s2 + $0x1d0] sm:$0xff]
  %v1442 = vld [vmem:[%s2 + $0x1d8] sm:$0xff]
  %v1443 = vld [vmem:[%s2 + $0x1e0] sm:$0xff]
  %v1444 = vld [vmem:[%s2 + $0x1e8] sm:$0xff]
  %v1445 = vld [vmem:[%s2 + $0x1f0] sm:$0xff]
  %v1446 = vld [vmem:[%s2 + $0x1f8] sm:$0xff]
  %v1447 = vld [vmem:[%s2 + $0x200] sm:$0xff]
  %v1448 = vld [vmem:[%s2 + $0x208] sm:$0xff]
  %v1449 = vld [vmem:[%s2 + $0x210] sm:$0xff]
  %v1450 = vld [vmem:[%s2 + $0x218] sm:$0xff]
  %v1451 = vld [vmem:[%s2 + $0x220] sm:$0xff]
  %v1452 = vld [vmem:[%s2 + $0x228] sm:$0xff]
  %v1453 = vld [vmem:[%s2 + $0x230] sm:$0xff]
  %v1454 = vld [vmem:[%s2 + $0x238] sm:$0xff]
  %v1455 = vmul.f32 %v735, %v1311
  %v1456 = vmul.f32 %v736, %v1312
  %v1457 = vmul.f32 %v737, %v1313
  %v1458 = vmul.f32 %v738, %v1314
  %v1459 = vmul.f32 %v739, %v1315
  %v1460 = vmul.f32 %v740, %v1316
  %v1461 = vmul.f32 %v741, %v1317
  %v1462 = vmul.f32 %v742, %v1318
  %v1463 = vmul.f32 %v743, %v1319
  %v1464 = vmul.f32 %v744, %v1320
  %v1465 = vmul.f32 %v745, %v1321
  %v1466 = vmul.f32 %v746, %v1322
  %v1467 = vmul.f32 %v747, %v1323
  %v1468 = vmul.f32 %v748, %v1324
  %v1469 = vmul.f32 %v749, %v1325
  %v1470 = vmul.f32 %v750, %v1326
  %v1471 = vmul.f32 %v751, %v1327
  %v1472 = vmul.f32 %v752, %v1328
  %v1473 = vmul.f32 %v753, %v1329
  %v1474 = vmul.f32 %v754, %v1330
  %v1475 = vmul.f32 %v755, %v1331
  %v1476 = vmul.f32 %v756, %v1332
  %v1477 = vmul.f32 %v757, %v1333
  %v1478 = vmul.f32 %v758, %v1334
  %v1479 = vmul.f32 %v759, %v1335
  %v1480 = vmul.f32 %v760, %v1336
  %v1481 = vmul.f32 %v761, %v1337
  %v1482 = vmul.f32 %v762, %v1338
  %v1483 = vmul.f32 %v763, %v1339
  %v1484 = vmul.f32 %v764, %v1340
  %v1485 = vmul.f32 %v765, %v1341
  %v1486 = vmul.f32 %v766, %v1342
  %v1487 = vmul.f32 %v767, %v1343
  %v1488 = vmul.f32 %v768, %v1344
  %v1489 = vmul.f32 %v769, %v1345
  %v1490 = vmul.f32 %v770, %v1346
  %v1491 = vmul.f32 %v771, %v1347
  %v1492 = vmul.f32 %v772, %v1348
  %v1493 = vmul.f32 %v773, %v1349
  %v1494 = vmul.f32 %v774, %v1350
  %v1495 = vmul.f32 %v775, %v1351
  %v1496 = vmul.f32 %v776, %v1352
  %v1497 = vmul.f32 %v777, %v1353
  %v1498 = vmul.f32 %v778, %v1354
  %v1499 = vmul.f32 %v779, %v1355
  %v1500 = vmul.f32 %v780, %v1356
  %v1501 = vmul.f32 %v781, %v1357
  %v1502 = vmul.f32 %v782, %v1358
  %v1503 = vmul.f32 %v783, %v1359
  %v1504 = vmul.f32 %v784, %v1360
  %v1505 = vmul.f32 %v785, %v1361
  %v1506 = vmul.f32 %v786, %v1362
  %v1507 = vmul.f32 %v787, %v1363
  %v1508 = vmul.f32 %v788, %v1364
  %v1509 = vmul.f32 %v789, %v1365
  %v1510 = vmul.f32 %v790, %v1366
  %v1511 = vmul.f32 %v791, %v1367
  %v1512 = vmul.f32 %v792, %v1368
  %v1513 = vmul.f32 %v793, %v1369
  %v1514 = vmul.f32 %v794, %v1370
  %v1515 = vmul.f32 %v795, %v1371
  %v1516 = vmul.f32 %v796, %v1372
  %v1517 = vmul.f32 %v797, %v1373
  %v1518 = vmul.f32 %v798, %v1374
  %v1519 = vmul.f32 %v799, %v1375
  %v1520 = vmul.f32 %v800, %v1376
  %v1521 = vmul.f32 %v801, %v1377
  %v1522 = vmul.f32 %v802, %v1378
  %v1523 = vmul.f32 %v803, %v1379
  %v1524 = vmul.f32 %v804, %v1380
  %v1525 = vmul.f32 %v805, %v1381
  %v1526 = vmul.f32 %v806, %v1382
  %v1527 = vsub.f32 %v1383, %v1455
  %v1528 = vsub.f32 %v1384, %v1456
  %v1529 = vsub.f32 %v1385, %v1457
  %v1530 = vsub.f32 %v1386, %v1458
  %v1531 = vsub.f32 %v1387, %v1459
  %v1532 = vsub.f32 %v1388, %v1460
  %v1533 = vsub.f32 %v1389, %v1461
  %v1534 = vsub.f32 %v1390, %v1462
  %v1535 = vsub.f32 %v1391, %v1463
  %v1536 = vsub.f32 %v1392, %v1464
  %v1537 = vsub.f32 %v1393, %v1465
  %v1538 = vsub.f32 %v1394, %v1466
  %v1539 = vsub.f32 %v1395, %v1467
  %v1540 = vsub.f32 %v1396, %v1468
  %v1541 = vsub.f32 %v1397, %v1469
  %v1542 = vsub.f32 %v1398, %v1470
  %v1543 = vsub.f32 %v1399, %v1471
  %v1544 = vsub.f32 %v1400, %v1472
  %v1545 = vsub.f32 %v1401, %v1473
  %v1546 = vsub.f32 %v1402, %v1474
  %v1547 = vsub.f32 %v1403, %v1475
  %v1548 = vsub.f32 %v1404, %v1476
  %v1549 = vsub.f32 %v1405, %v1477
  %v1550 = vsub.f32 %v1406, %v1478
  %v1551 = vsub.f32 %v1407, %v1479
  %v1552 = vsub.f32 %v1408, %v1480
  %v1553 = vsub.f32 %v1409, %v1481
  %v1554 = vsub.f32 %v1410, %v1482
  %v1555 = vsub.f32 %v1411, %v1483
  %v1556 = vsub.f32 %v1412, %v1484
  %v1557 = vsub.f32 %v1413, %v1485
  %v1558 = vsub.f32 %v1414, %v1486
  %v1559 = vsub.f32 %v1415, %v1487
  %v1560 = vsub.f32 %v1416, %v1488
  %v1561 = vsub.f32 %v1417, %v1489
  %v1562 = vsub.f32 %v1418, %v1490
  %v1563 = vsub.f32 %v1419, %v1491
  %v1564 = vsub.f32 %v1420, %v1492
  %v1565 = vsub.f32 %v1421, %v1493
  %v1566 = vsub.f32 %v1422, %v1494
  %v1567 = vsub.f32 %v1423, %v1495
  %v1568 = vsub.f32 %v1424, %v1496
  %v1569 = vsub.f32 %v1425, %v1497
  %v1570 = vsub.f32 %v1426, %v1498
  %v1571 = vsub.f32 %v1427, %v1499
  %v1572 = vsub.f32 %v1428, %v1500
  %v1573 = vsub.f32 %v1429, %v1501
  %v1574 = vsub.f32 %v1430, %v1502
  %v1575 = vsub.f32 %v1431, %v1503
  %v1576 = vsub.f32 %v1432, %v1504
  %v1577 = vsub.f32 %v1433, %v1505
  %v1578 = vsub.f32 %v1434, %v1506
  %v1579 = vsub.f32 %v1435, %v1507
  %v1580 = vsub.f32 %v1436, %v1508
  %v1581 = vsub.f32 %v1437, %v1509
  %v1582 = vsub.f32 %v1438, %v1510
  %v1583 = vsub.f32 %v1439, %v1511
  %v1584 = vsub.f32 %v1440, %v1512
  %v1585 = vsub.f32 %v1441, %v1513
  %v1586 = vsub.f32 %v1442, %v1514
  %v1587 = vsub.f32 %v1443, %v1515
  %v1588 = vsub.f32 %v1444, %v1516
  %v1589 = vsub.f32 %v1445, %v1517
  %v1590 = vsub.f32 %v1446, %v1518
  %v1591 = vsub.f32 %v1447, %v1519
  %v1592 = vsub.f32 %v1448, %v1520
  %v1593 = vsub.f32 %v1449, %v1521
  %v1594 = vsub.f32 %v1450, %v1522
  %v1595 = vsub.f32 %v1451, %v1523
  %v1596 = vsub.f32 %v1452, %v1524
  %v1597 = vsub.f32 %v1453, %v1525
  %v1598 = vsub.f32 %v1454, %v1526
  %1600 = vset.pattern.permute.xlu0 0
  %1601 = vperm.xlu0 %1600, %v1311
  %v1602 = vpop.permute.xlu0 %1601
  %1605 = vset.pattern.permute.xlu0 0
  %1606 = vperm.xlu0 %1605, %v1312
  %v1607 = vpop.permute.xlu0 %1606
  %1610 = vset.pattern.permute.xlu0 0
  %1611 = vperm.xlu0 %1610, %v1313
  %v1612 = vpop.permute.xlu0 %1611
  %1615 = vset.pattern.permute.xlu0 0
  %1616 = vperm.xlu0 %1615, %v1314
  %v1617 = vpop.permute.xlu0 %1616
  %1620 = vset.pattern.permute.xlu0 0
  %1621 = vperm.xlu0 %1620, %v1315
  %v1622 = vpop.permute.xlu0 %1621
  %1625 = vset.pattern.permute.xlu0 0
  %1626 = vperm.xlu0 %1625, %v1316
  %v1627 = vpop.permute.xlu0 %1626
  %1630 = vset.pattern.permute.xlu0 0
  %1631 = vperm.xlu0 %1630, %v1317
  %v1632 = vpop.permute.xlu0 %1631
  %1635 = vset.pattern.permute.xlu0 0
  %1636 = vperm.xlu0 %1635, %v1318
  %v1637 = vpop.permute.xlu0 %1636
  %1640 = vset.pattern.permute.xlu0 0
  %1641 = vperm.xlu0 %1640, %v1319
  %v1642 = vpop.permute.xlu0 %1641
  %1645 = vset.pattern.permute.xlu0 0
  %1646 = vperm.xlu0 %1645, %v1320
  %v1647 = vpop.permute.xlu0 %1646
  %1650 = vset.pattern.permute.xlu0 0
  %1651 = vperm.xlu0 %1650, %v1321
  %v1652 = vpop.permute.xlu0 %1651
  %1655 = vset.pattern.permute.xlu0 0
  %1656 = vperm.xlu0 %1655, %v1322
  %v1657 = vpop.permute.xlu0 %1656
  %1660 = vset.pattern.permute.xlu0 0
  %1661 = vperm.xlu0 %1660, %v1323
  %v1662 = vpop.permute.xlu0 %1661
  %1665 = vset.pattern.permute.xlu0 0
  %1666 = vperm.xlu0 %1665, %v1324
  %v1667 = vpop.permute.xlu0 %1666
  %1670 = vset.pattern.permute.xlu0 0
  %1671 = vperm.xlu0 %1670, %v1325
  %v1672 = vpop.permute.xlu0 %1671
  %1675 = vset.pattern.permute.xlu0 0
  %1676 = vperm.xlu0 %1675, %v1326
  %v1677 = vpop.permute.xlu0 %1676
  %1680 = vset.pattern.permute.xlu0 0
  %1681 = vperm.xlu0 %1680, %v1327
  %v1682 = vpop.permute.xlu0 %1681
  %1685 = vset.pattern.permute.xlu0 0
  %1686 = vperm.xlu0 %1685, %v1328
  %v1687 = vpop.permute.xlu0 %1686
  %1690 = vset.pattern.permute.xlu0 0
  %1691 = vperm.xlu0 %1690, %v1329
  %v1692 = vpop.permute.xlu0 %1691
  %1695 = vset.pattern.permute.xlu0 0
  %1696 = vperm.xlu0 %1695, %v1330
  %v1697 = vpop.permute.xlu0 %1696
  %1700 = vset.pattern.permute.xlu0 0
  %1701 = vperm.xlu0 %1700, %v1331
  %v1702 = vpop.permute.xlu0 %1701
  %1705 = vset.pattern.permute.xlu0 0
  %1706 = vperm.xlu0 %1705, %v1332
  %v1707 = vpop.permute.xlu0 %1706
  %1710 = vset.pattern.permute.xlu0 0
  %1711 = vperm.xlu0 %1710, %v1333
  %v1712 = vpop.permute.xlu0 %1711
  %1715 = vset.pattern.permute.xlu0 0
  %1716 = vperm.xlu0 %1715, %v1334
  %v1717 = vpop.permute.xlu0 %1716
  %1720 = vset.pattern.permute.xlu0 0
  %1721 = vperm.xlu0 %1720, %v1335
  %v1722 = vpop.permute.xlu0 %1721
  %1725 = vset.pattern.permute.xlu0 0
  %1726 = vperm.xlu0 %1725, %v1336
  %v1727 = vpop.permute.xlu0 %1726
  %1730 = vset.pattern.permute.xlu0 0
  %1731 = vperm.xlu0 %1730, %v1337
  %v1732 = vpop.permute.xlu0 %1731
  %1735 = vset.pattern.permute.xlu0 0
  %1736 = vperm.xlu0 %1735, %v1338
  %v1737 = vpop.permute.xlu0 %1736
  %1740 = vset.pattern.permute.xlu0 0
  %1741 = vperm.xlu0 %1740, %v1339
  %v1742 = vpop.permute.xlu0 %1741
  %1745 = vset.pattern.permute.xlu0 0
  %1746 = vperm.xlu0 %1745, %v1340
  %v1747 = vpop.permute.xlu0 %1746
  %1750 = vset.pattern.permute.xlu0 0
  %1751 = vperm.xlu0 %1750, %v1341
  %v1752 = vpop.permute.xlu0 %1751
  %1755 = vset.pattern.permute.xlu0 0
  %1756 = vperm.xlu0 %1755, %v1342
  %v1757 = vpop.permute.xlu0 %1756
  %1760 = vset.pattern.permute.xlu0 0
  %1761 = vperm.xlu0 %1760, %v1343
  %v1762 = vpop.permute.xlu0 %1761
  %1765 = vset.pattern.permute.xlu0 0
  %1766 = vperm.xlu0 %1765, %v1344
  %v1767 = vpop.permute.xlu0 %1766
  %1770 = vset.pattern.permute.xlu0 0
  %1771 = vperm.xlu0 %1770, %v1345
  %v1772 = vpop.permute.xlu0 %1771
  %1775 = vset.pattern.permute.xlu0 0
  %1776 = vperm.xlu0 %1775, %v1346
  %v1777 = vpop.permute.xlu0 %1776
  %1780 = vset.pattern.permute.xlu0 0
  %1781 = vperm.xlu0 %1780, %v1347
  %v1782 = vpop.permute.xlu0 %1781
  %1785 = vset.pattern.permute.xlu0 0
  %1786 = vperm.xlu0 %1785, %v1348
  %v1787 = vpop.permute.xlu0 %1786
  %1790 = vset.pattern.permute.xlu0 0
  %1791 = vperm.xlu0 %1790, %v1349
  %v1792 = vpop.permute.xlu0 %1791
  %1795 = vset.pattern.permute.xlu0 0
  %1796 = vperm.xlu0 %1795, %v1350
  %v1797 = vpop.permute.xlu0 %1796
  %1800 = vset.pattern.permute.xlu0 0
  %1801 = vperm.xlu0 %1800, %v1351
  %v1802 = vpop.permute.xlu0 %1801
  %1805 = vset.pattern.permute.xlu0 0
  %1806 = vperm.xlu0 %1805, %v1352
  %v1807 = vpop.permute.xlu0 %1806
  %1810 = vset.pattern.permute.xlu0 0
  %1811 = vperm.xlu0 %1810, %v1353
  %v1812 = vpop.permute.xlu0 %1811
  %1815 = vset.pattern.permute.xlu0 0
  %1816 = vperm.xlu0 %1815, %v1354
  %v1817 = vpop.permute.xlu0 %1816
  %1820 = vset.pattern.permute.xlu0 0
  %1821 = vperm.xlu0 %1820, %v1355
  %v1822 = vpop.permute.xlu0 %1821
  %1825 = vset.pattern.permute.xlu0 0
  %1826 = vperm.xlu0 %1825, %v1356
  %v1827 = vpop.permute.xlu0 %1826
  %1830 = vset.pattern.permute.xlu0 0
  %1831 = vperm.xlu0 %1830, %v1357
  %v1832 = vpop.permute.xlu0 %1831
  %1835 = vset.pattern.permute.xlu0 0
  %1836 = vperm.xlu0 %1835, %v1358
  %v1837 = vpop.permute.xlu0 %1836
  %1840 = vset.pattern.permute.xlu0 0
  %1841 = vperm.xlu0 %1840, %v1359
  %v1842 = vpop.permute.xlu0 %1841
  %1845 = vset.pattern.permute.xlu0 0
  %1846 = vperm.xlu0 %1845, %v1360
  %v1847 = vpop.permute.xlu0 %1846
  %1850 = vset.pattern.permute.xlu0 0
  %1851 = vperm.xlu0 %1850, %v1361
  %v1852 = vpop.permute.xlu0 %1851
  %1855 = vset.pattern.permute.xlu0 0
  %1856 = vperm.xlu0 %1855, %v1362
  %v1857 = vpop.permute.xlu0 %1856
  %1860 = vset.pattern.permute.xlu0 0
  %1861 = vperm.xlu0 %1860, %v1363
  %v1862 = vpop.permute.xlu0 %1861
  %1865 = vset.pattern.permute.xlu0 0
  %1866 = vperm.xlu0 %1865, %v1364
  %v1867 = vpop.permute.xlu0 %1866
  %1870 = vset.pattern.permute.xlu0 0
  %1871 = vperm.xlu0 %1870, %v1365
  %v1872 = vpop.permute.xlu0 %1871
  %1875 = vset.pattern.permute.xlu0 0
  %1876 = vperm.xlu0 %1875, %v1366
  %v1877 = vpop.permute.xlu0 %1876
  %1880 = vset.pattern.permute.xlu0 0
  %1881 = vperm.xlu0 %1880, %v1367
  %v1882 = vpop.permute.xlu0 %1881
  %1885 = vset.pattern.permute.xlu0 0
  %1886 = vperm.xlu0 %1885, %v1368
  %v1887 = vpop.permute.xlu0 %1886
  %1890 = vset.pattern.permute.xlu0 0
  %1891 = vperm.xlu0 %1890, %v1369
  %v1892 = vpop.permute.xlu0 %1891
  %1895 = vset.pattern.permute.xlu0 0
  %1896 = vperm.xlu0 %1895, %v1370
  %v1897 = vpop.permute.xlu0 %1896
  %1900 = vset.pattern.permute.xlu0 0
  %1901 = vperm.xlu0 %1900, %v1371
  %v1902 = vpop.permute.xlu0 %1901
  %1905 = vset.pattern.permute.xlu0 0
  %1906 = vperm.xlu0 %1905, %v1372
  %v1907 = vpop.permute.xlu0 %1906
  %1910 = vset.pattern.permute.xlu0 0
  %1911 = vperm.xlu0 %1910, %v1373
  %v1912 = vpop.permute.xlu0 %1911
  %1915 = vset.pattern.permute.xlu0 0
  %1916 = vperm.xlu0 %1915, %v1374
  %v1917 = vpop.permute.xlu0 %1916
  %1920 = vset.pattern.permute.xlu0 0
  %1921 = vperm.xlu0 %1920, %v1375
  %v1922 = vpop.permute.xlu0 %1921
  %1925 = vset.pattern.permute.xlu0 0
  %1926 = vperm.xlu0 %1925, %v1376
  %v1927 = vpop.permute.xlu0 %1926
  %1930 = vset.pattern.permute.xlu0 0
  %1931 = vperm.xlu0 %1930, %v1377
  %v1932 = vpop.permute.xlu0 %1931
  %1935 = vset.pattern.permute.xlu0 0
  %1936 = vperm.xlu0 %1935, %v1378
  %v1937 = vpop.permute.xlu0 %1936
  %1940 = vset.pattern.permute.xlu0 0
  %1941 = vperm.xlu0 %1940, %v1379
  %v1942 = vpop.permute.xlu0 %1941
  %1945 = vset.pattern.permute.xlu0 0
  %1946 = vperm.xlu0 %1945, %v1380
  %v1947 = vpop.permute.xlu0 %1946
  %1950 = vset.pattern.permute.xlu0 0
  %1951 = vperm.xlu0 %1950, %v1381
  %v1952 = vpop.permute.xlu0 %1951
  %1955 = vset.pattern.permute.xlu0 0
  %1956 = vperm.xlu0 %1955, %v1382
  %v1957 = vpop.permute.xlu0 %1956
  %v1959 = vmul.f32 %v14, %v1602
  %v1960 = vmul.f32 %v15, %v1607
  %v1961 = vmul.f32 %v16, %v1612
  %v1962 = vmul.f32 %v17, %v1617
  %v1963 = vmul.f32 %v18, %v1622
  %v1964 = vmul.f32 %v19, %v1627
  %v1965 = vmul.f32 %v20, %v1632
  %v1966 = vmul.f32 %v21, %v1637
  %v1967 = vmul.f32 %v22, %v1642
  %v1968 = vmul.f32 %v23, %v1647
  %v1969 = vmul.f32 %v24, %v1652
  %v1970 = vmul.f32 %v25, %v1657
  %v1971 = vmul.f32 %v26, %v1662
  %v1972 = vmul.f32 %v27, %v1667
  %v1973 = vmul.f32 %v28, %v1672
  %v1974 = vmul.f32 %v29, %v1677
  %v1975 = vmul.f32 %v30, %v1682
  %v1976 = vmul.f32 %v31, %v1687
  %v1977 = vmul.f32 %v32, %v1692
  %v1978 = vmul.f32 %v33, %v1697
  %v1979 = vmul.f32 %v34, %v1702
  %v1980 = vmul.f32 %v35, %v1707
  %v1981 = vmul.f32 %v36, %v1712
  %v1982 = vmul.f32 %v37, %v1717
  %v1983 = vmul.f32 %v38, %v1722
  %v1984 = vmul.f32 %v39, %v1727
  %v1985 = vmul.f32 %v40, %v1732
  %v1986 = vmul.f32 %v41, %v1737
  %v1987 = vmul.f32 %v42, %v1742
  %v1988 = vmul.f32 %v43, %v1747
  %v1989 = vmul.f32 %v44, %v1752
  %v1990 = vmul.f32 %v45, %v1757
  %v1991 = vmul.f32 %v46, %v1762
  %v1992 = vmul.f32 %v47, %v1767
  %v1993 = vmul.f32 %v48, %v1772
  %v1994 = vmul.f32 %v49, %v1777
  %v1995 = vmul.f32 %v50, %v1782
  %v1996 = vmul.f32 %v51, %v1787
  %v1997 = vmul.f32 %v52, %v1792
  %v1998 = vmul.f32 %v53, %v1797
  %v1999 = vmul.f32 %v54, %v1802
  %v2000 = vmul.f32 %v55, %v1807
  %v2001 = vmul.f32 %v56, %v1812
  %v2002 = vmul.f32 %v57, %v1817
  %v2003 = vmul.f32 %v58, %v1822
  %v2004 = vmul.f32 %v59, %v1827
  %v2005 = vmul.f32 %v60, %v1832
  %v2006 = vmul.f32 %v61, %v1837
  %v2007 = vmul.f32 %v62, %v1842
  %v2008 = vmul.f32 %v63, %v1847
  %v2009 = vmul.f32 %v64, %v1852
  %v2010 = vmul.f32 %v65, %v1857
  %v2011 = vmul.f32 %v66, %v1862
  %v2012 = vmul.f32 %v67, %v1867
  %v2013 = vmul.f32 %v68, %v1872
  %v2014 = vmul.f32 %v69, %v1877
  %v2015 = vmul.f32 %v70, %v1882
  %v2016 = vmul.f32 %v71, %v1887
  %v2017 = vmul.f32 %v72, %v1892
  %v2018 = vmul.f32 %v73, %v1897
  %v2019 = vmul.f32 %v74, %v1902
  %v2020 = vmul.f32 %v75, %v1907
  %v2021 = vmul.f32 %v76, %v1912
  %v2022 = vmul.f32 %v77, %v1917
  %v2023 = vmul.f32 %v78, %v1922
  %v2024 = vmul.f32 %v79, %v1927
  %v2025 = vmul.f32 %v80, %v1932
  %v2026 = vmul.f32 %v81, %v1937
  %v2027 = vmul.f32 %v82, %v1942
  %v2028 = vmul.f32 %v83, %v1947
  %v2029 = vmul.f32 %v84, %v1952
  %v2030 = vmul.f32 %v85, %v1957
  %2032 = vset.pattern.permute.xlu0 0
  %2033 = vperm.xlu0 %2032, %v1527
  %v2034 = vpop.permute.xlu0 %2033
  %2037 = vset.pattern.permute.xlu0 0
  %2038 = vperm.xlu0 %2037, %v1528
  %v2039 = vpop.permute.xlu0 %2038
  %2042 = vset.pattern.permute.xlu0 0
  %2043 = vperm.xlu0 %2042, %v1529
  %v2044 = vpop.permute.xlu0 %2043
  %2047 = vset.pattern.permute.xlu0 0
  %2048 = vperm.xlu0 %2047, %v1530
  %v2049 = vpop.permute.xlu0 %2048
  %2052 = vset.pattern.permute.xlu0 0
  %2053 = vperm.xlu0 %2052, %v1531
  %v2054 = vpop.permute.xlu0 %2053
  %2057 = vset.pattern.permute.xlu0 0
  %2058 = vperm.xlu0 %2057, %v1532
  %v2059 = vpop.permute.xlu0 %2058
  %2062 = vset.pattern.permute.xlu0 0
  %2063 = vperm.xlu0 %2062, %v1533
  %v2064 = vpop.permute.xlu0 %2063
  %2067 = vset.pattern.permute.xlu0 0
  %2068 = vperm.xlu0 %2067, %v1534
  %v2069 = vpop.permute.xlu0 %2068
  %2072 = vset.pattern.permute.xlu0 0
  %2073 = vperm.xlu0 %2072, %v1535
  %v2074 = vpop.permute.xlu0 %2073
  %2077 = vset.pattern.permute.xlu0 0
  %2078 = vperm.xlu0 %2077, %v1536
  %v2079 = vpop.permute.xlu0 %2078
  %2082 = vset.pattern.permute.xlu0 0
  %2083 = vperm.xlu0 %2082, %v1537
  %v2084 = vpop.permute.xlu0 %2083
  %2087 = vset.pattern.permute.xlu0 0
  %2088 = vperm.xlu0 %2087, %v1538
  %v2089 = vpop.permute.xlu0 %2088
  %2092 = vset.pattern.permute.xlu0 0
  %2093 = vperm.xlu0 %2092, %v1539
  %v2094 = vpop.permute.xlu0 %2093
  %2097 = vset.pattern.permute.xlu0 0
  %2098 = vperm.xlu0 %2097, %v1540
  %v2099 = vpop.permute.xlu0 %2098
  %2102 = vset.pattern.permute.xlu0 0
  %2103 = vperm.xlu0 %2102, %v1541
  %v2104 = vpop.permute.xlu0 %2103
  %2107 = vset.pattern.permute.xlu0 0
  %2108 = vperm.xlu0 %2107, %v1542
  %v2109 = vpop.permute.xlu0 %2108
  %2112 = vset.pattern.permute.xlu0 0
  %2113 = vperm.xlu0 %2112, %v1543
  %v2114 = vpop.permute.xlu0 %2113
  %2117 = vset.pattern.permute.xlu0 0
  %2118 = vperm.xlu0 %2117, %v1544
  %v2119 = vpop.permute.xlu0 %2118
  %2122 = vset.pattern.permute.xlu0 0
  %2123 = vperm.xlu0 %2122, %v1545
  %v2124 = vpop.permute.xlu0 %2123
  %2127 = vset.pattern.permute.xlu0 0
  %2128 = vperm.xlu0 %2127, %v1546
  %v2129 = vpop.permute.xlu0 %2128
  %2132 = vset.pattern.permute.xlu0 0
  %2133 = vperm.xlu0 %2132, %v1547
  %v2134 = vpop.permute.xlu0 %2133
  %2137 = vset.pattern.permute.xlu0 0
  %2138 = vperm.xlu0 %2137, %v1548
  %v2139 = vpop.permute.xlu0 %2138
  %2142 = vset.pattern.permute.xlu0 0
  %2143 = vperm.xlu0 %2142, %v1549
  %v2144 = vpop.permute.xlu0 %2143
  %2147 = vset.pattern.permute.xlu0 0
  %2148 = vperm.xlu0 %2147, %v1550
  %v2149 = vpop.permute.xlu0 %2148
  %2152 = vset.pattern.permute.xlu0 0
  %2153 = vperm.xlu0 %2152, %v1551
  %v2154 = vpop.permute.xlu0 %2153
  %2157 = vset.pattern.permute.xlu0 0
  %2158 = vperm.xlu0 %2157, %v1552
  %v2159 = vpop.permute.xlu0 %2158
  %2162 = vset.pattern.permute.xlu0 0
  %2163 = vperm.xlu0 %2162, %v1553
  %v2164 = vpop.permute.xlu0 %2163
  %2167 = vset.pattern.permute.xlu0 0
  %2168 = vperm.xlu0 %2167, %v1554
  %v2169 = vpop.permute.xlu0 %2168
  %2172 = vset.pattern.permute.xlu0 0
  %2173 = vperm.xlu0 %2172, %v1555
  %v2174 = vpop.permute.xlu0 %2173
  %2177 = vset.pattern.permute.xlu0 0
  %2178 = vperm.xlu0 %2177, %v1556
  %v2179 = vpop.permute.xlu0 %2178
  %2182 = vset.pattern.permute.xlu0 0
  %2183 = vperm.xlu0 %2182, %v1557
  %v2184 = vpop.permute.xlu0 %2183
  %2187 = vset.pattern.permute.xlu0 0
  %2188 = vperm.xlu0 %2187, %v1558
  %v2189 = vpop.permute.xlu0 %2188
  %2192 = vset.pattern.permute.xlu0 0
  %2193 = vperm.xlu0 %2192, %v1559
  %v2194 = vpop.permute.xlu0 %2193
  %2197 = vset.pattern.permute.xlu0 0
  %2198 = vperm.xlu0 %2197, %v1560
  %v2199 = vpop.permute.xlu0 %2198
  %2202 = vset.pattern.permute.xlu0 0
  %2203 = vperm.xlu0 %2202, %v1561
  %v2204 = vpop.permute.xlu0 %2203
  %2207 = vset.pattern.permute.xlu0 0
  %2208 = vperm.xlu0 %2207, %v1562
  %v2209 = vpop.permute.xlu0 %2208
  %2212 = vset.pattern.permute.xlu0 0
  %2213 = vperm.xlu0 %2212, %v1563
  %v2214 = vpop.permute.xlu0 %2213
  %2217 = vset.pattern.permute.xlu0 0
  %2218 = vperm.xlu0 %2217, %v1564
  %v2219 = vpop.permute.xlu0 %2218
  %2222 = vset.pattern.permute.xlu0 0
  %2223 = vperm.xlu0 %2222, %v1565
  %v2224 = vpop.permute.xlu0 %2223
  %2227 = vset.pattern.permute.xlu0 0
  %2228 = vperm.xlu0 %2227, %v1566
  %v2229 = vpop.permute.xlu0 %2228
  %2232 = vset.pattern.permute.xlu0 0
  %2233 = vperm.xlu0 %2232, %v1567
  %v2234 = vpop.permute.xlu0 %2233
  %2237 = vset.pattern.permute.xlu0 0
  %2238 = vperm.xlu0 %2237, %v1568
  %v2239 = vpop.permute.xlu0 %2238
  %2242 = vset.pattern.permute.xlu0 0
  %2243 = vperm.xlu0 %2242, %v1569
  %v2244 = vpop.permute.xlu0 %2243
  %2247 = vset.pattern.permute.xlu0 0
  %2248 = vperm.xlu0 %2247, %v1570
  %v2249 = vpop.permute.xlu0 %2248
  %2252 = vset.pattern.permute.xlu0 0
  %2253 = vperm.xlu0 %2252, %v1571
  %v2254 = vpop.permute.xlu0 %2253
  %2257 = vset.pattern.permute.xlu0 0
  %2258 = vperm.xlu0 %2257, %v1572
  %v2259 = vpop.permute.xlu0 %2258
  %2262 = vset.pattern.permute.xlu0 0
  %2263 = vperm.xlu0 %2262, %v1573
  %v2264 = vpop.permute.xlu0 %2263
  %2267 = vset.pattern.permute.xlu0 0
  %2268 = vperm.xlu0 %2267, %v1574
  %v2269 = vpop.permute.xlu0 %2268
  %2272 = vset.pattern.permute.xlu0 0
  %2273 = vperm.xlu0 %2272, %v1575
  %v2274 = vpop.permute.xlu0 %2273
  %2277 = vset.pattern.permute.xlu0 0
  %2278 = vperm.xlu0 %2277, %v1576
  %v2279 = vpop.permute.xlu0 %2278
  %2282 = vset.pattern.permute.xlu0 0
  %2283 = vperm.xlu0 %2282, %v1577
  %v2284 = vpop.permute.xlu0 %2283
  %2287 = vset.pattern.permute.xlu0 0
  %2288 = vperm.xlu0 %2287, %v1578
  %v2289 = vpop.permute.xlu0 %2288
  %2292 = vset.pattern.permute.xlu0 0
  %2293 = vperm.xlu0 %2292, %v1579
  %v2294 = vpop.permute.xlu0 %2293
  %2297 = vset.pattern.permute.xlu0 0
  %2298 = vperm.xlu0 %2297, %v1580
  %v2299 = vpop.permute.xlu0 %2298
  %2302 = vset.pattern.permute.xlu0 0
  %2303 = vperm.xlu0 %2302, %v1581
  %v2304 = vpop.permute.xlu0 %2303
  %2307 = vset.pattern.permute.xlu0 0
  %2308 = vperm.xlu0 %2307, %v1582
  %v2309 = vpop.permute.xlu0 %2308
  %2312 = vset.pattern.permute.xlu0 0
  %2313 = vperm.xlu0 %2312, %v1583
  %v2314 = vpop.permute.xlu0 %2313
  %2317 = vset.pattern.permute.xlu0 0
  %2318 = vperm.xlu0 %2317, %v1584
  %v2319 = vpop.permute.xlu0 %2318
  %2322 = vset.pattern.permute.xlu0 0
  %2323 = vperm.xlu0 %2322, %v1585
  %v2324 = vpop.permute.xlu0 %2323
  %2327 = vset.pattern.permute.xlu0 0
  %2328 = vperm.xlu0 %2327, %v1586
  %v2329 = vpop.permute.xlu0 %2328
  %2332 = vset.pattern.permute.xlu0 0
  %2333 = vperm.xlu0 %2332, %v1587
  %v2334 = vpop.permute.xlu0 %2333
  %2337 = vset.pattern.permute.xlu0 0
  %2338 = vperm.xlu0 %2337, %v1588
  %v2339 = vpop.permute.xlu0 %2338
  %2342 = vset.pattern.permute.xlu0 0
  %2343 = vperm.xlu0 %2342, %v1589
  %v2344 = vpop.permute.xlu0 %2343
  %2347 = vset.pattern.permute.xlu0 0
  %2348 = vperm.xlu0 %2347, %v1590
  %v2349 = vpop.permute.xlu0 %2348
  %2352 = vset.pattern.permute.xlu0 0
  %2353 = vperm.xlu0 %2352, %v1591
  %v2354 = vpop.permute.xlu0 %2353
  %2357 = vset.pattern.permute.xlu0 0
  %2358 = vperm.xlu0 %2357, %v1592
  %v2359 = vpop.permute.xlu0 %2358
  %2362 = vset.pattern.permute.xlu0 0
  %2363 = vperm.xlu0 %2362, %v1593
  %v2364 = vpop.permute.xlu0 %2363
  %2367 = vset.pattern.permute.xlu0 0
  %2368 = vperm.xlu0 %2367, %v1594
  %v2369 = vpop.permute.xlu0 %2368
  %2372 = vset.pattern.permute.xlu0 0
  %2373 = vperm.xlu0 %2372, %v1595
  %v2374 = vpop.permute.xlu0 %2373
  %2377 = vset.pattern.permute.xlu0 0
  %2378 = vperm.xlu0 %2377, %v1596
  %v2379 = vpop.permute.xlu0 %2378
  %2382 = vset.pattern.permute.xlu0 0
  %2383 = vperm.xlu0 %2382, %v1597
  %v2384 = vpop.permute.xlu0 %2383
  %2387 = vset.pattern.permute.xlu0 0
  %2388 = vperm.xlu0 %2387, %v1598
  %v2389 = vpop.permute.xlu0 %2388
  %v2391 = vadd.f32 %v1959, %v2034
  %v2392 = vadd.f32 %v1960, %v2039
  %v2393 = vadd.f32 %v1961, %v2044
  %v2394 = vadd.f32 %v1962, %v2049
  %v2395 = vadd.f32 %v1963, %v2054
  %v2396 = vadd.f32 %v1964, %v2059
  %v2397 = vadd.f32 %v1965, %v2064
  %v2398 = vadd.f32 %v1966, %v2069
  %v2399 = vadd.f32 %v1967, %v2074
  %v2400 = vadd.f32 %v1968, %v2079
  %v2401 = vadd.f32 %v1969, %v2084
  %v2402 = vadd.f32 %v1970, %v2089
  %v2403 = vadd.f32 %v1971, %v2094
  %v2404 = vadd.f32 %v1972, %v2099
  %v2405 = vadd.f32 %v1973, %v2104
  %v2406 = vadd.f32 %v1974, %v2109
  %v2407 = vadd.f32 %v1975, %v2114
  %v2408 = vadd.f32 %v1976, %v2119
  %v2409 = vadd.f32 %v1977, %v2124
  %v2410 = vadd.f32 %v1978, %v2129
  %v2411 = vadd.f32 %v1979, %v2134
  %v2412 = vadd.f32 %v1980, %v2139
  %v2413 = vadd.f32 %v1981, %v2144
  %v2414 = vadd.f32 %v1982, %v2149
  %v2415 = vadd.f32 %v1983, %v2154
  %v2416 = vadd.f32 %v1984, %v2159
  %v2417 = vadd.f32 %v1985, %v2164
  %v2418 = vadd.f32 %v1986, %v2169
  %v2419 = vadd.f32 %v1987, %v2174
  %v2420 = vadd.f32 %v1988, %v2179
  %v2421 = vadd.f32 %v1989, %v2184
  %v2422 = vadd.f32 %v1990, %v2189
  %v2423 = vadd.f32 %v1991, %v2194
  %v2424 = vadd.f32 %v1992, %v2199
  %v2425 = vadd.f32 %v1993, %v2204
  %v2426 = vadd.f32 %v1994, %v2209
  %v2427 = vadd.f32 %v1995, %v2214
  %v2428 = vadd.f32 %v1996, %v2219
  %v2429 = vadd.f32 %v1997, %v2224
  %v2430 = vadd.f32 %v1998, %v2229
  %v2431 = vadd.f32 %v1999, %v2234
  %v2432 = vadd.f32 %v2000, %v2239
  %v2433 = vadd.f32 %v2001, %v2244
  %v2434 = vadd.f32 %v2002, %v2249
  %v2435 = vadd.f32 %v2003, %v2254
  %v2436 = vadd.f32 %v2004, %v2259
  %v2437 = vadd.f32 %v2005, %v2264
  %v2438 = vadd.f32 %v2006, %v2269
  %v2439 = vadd.f32 %v2007, %v2274
  %v2440 = vadd.f32 %v2008, %v2279
  %v2441 = vadd.f32 %v2009, %v2284
  %v2442 = vadd.f32 %v2010, %v2289
  %v2443 = vadd.f32 %v2011, %v2294
  %v2444 = vadd.f32 %v2012, %v2299
  %v2445 = vadd.f32 %v2013, %v2304
  %v2446 = vadd.f32 %v2014, %v2309
  %v2447 = vadd.f32 %v2015, %v2314
  %v2448 = vadd.f32 %v2016, %v2319
  %v2449 = vadd.f32 %v2017, %v2324
  %v2450 = vadd.f32 %v2018, %v2329
  %v2451 = vadd.f32 %v2019, %v2334
  %v2452 = vadd.f32 %v2020, %v2339
  %v2453 = vadd.f32 %v2021, %v2344
  %v2454 = vadd.f32 %v2022, %v2349
  %v2455 = vadd.f32 %v2023, %v2354
  %v2456 = vadd.f32 %v2024, %v2359
  %v2457 = vadd.f32 %v2025, %v2364
  %v2458 = vadd.f32 %v2026, %v2369
  %v2459 = vadd.f32 %v2027, %v2374
  %v2460 = vadd.f32 %v2028, %v2379
  %v2461 = vadd.f32 %v2029, %v2384
  %v2462 = vadd.f32 %v2030, %v2389
  %2463 = vst.msk [vmem:[%s3] sm:$0xff] %vm86, %v2391
  %2464 = vst.msk [vmem:[%s3 + $0x8] sm:$0xff] %vm86, %v2392
  %2465 = vst.msk [vmem:[%s3 + $0x10] sm:$0xff] %vm86, %v2393
  %2466 = vst.msk [vmem:[%s3 + $0x18] sm:$0xff] %vm86, %v2394
  %2467 = vst.msk [vmem:[%s3 + $0x20] sm:$0xff] %vm86, %v2395
  %2468 = vst.msk [vmem:[%s3 + $0x28] sm:$0xff] %vm86, %v2396
  %2469 = vst.msk [vmem:[%s3 + $0x30] sm:$0xff] %vm86, %v2397
  %2470 = vst.msk [vmem:[%s3 + $0x38] sm:$0xff] %vm86, %v2398
  %2471 = vst.msk [vmem:[%s3 + $0x40] sm:$0xff] %vm86, %v2399
  %2472 = vst.msk [vmem:[%s3 + $0x48] sm:$0xff] %vm86, %v2400
  %2473 = vst.msk [vmem:[%s3 + $0x50] sm:$0xff] %vm86, %v2401
  %2474 = vst.msk [vmem:[%s3 + $0x58] sm:$0xff] %vm86, %v2402
  %2475 = vst.msk [vmem:[%s3 + $0x60] sm:$0xff] %vm86, %v2403
  %2476 = vst.msk [vmem:[%s3 + $0x68] sm:$0xff] %vm86, %v2404
  %2477 = vst.msk [vmem:[%s3 + $0x70] sm:$0xff] %vm86, %v2405
  %2478 = vst.msk [vmem:[%s3 + $0x78] sm:$0xff] %vm86, %v2406
  %2479 = vst.msk [vmem:[%s3 + $0x80] sm:$0xff] %vm86, %v2407
  %2480 = vst.msk [vmem:[%s3 + $0x88] sm:$0xff] %vm86, %v2408
  %2481 = vst.msk [vmem:[%s3 + $0x90] sm:$0xff] %vm86, %v2409
  %2482 = vst.msk [vmem:[%s3 + $0x98] sm:$0xff] %vm86, %v2410
  %2483 = vst.msk [vmem:[%s3 + $0xa0] sm:$0xff] %vm86, %v2411
  %2484 = vst.msk [vmem:[%s3 + $0xa8] sm:$0xff] %vm86, %v2412
  %2485 = vst.msk [vmem:[%s3 + $0xb0] sm:$0xff] %vm86, %v2413
  %2486 = vst.msk [vmem:[%s3 + $0xb8] sm:$0xff] %vm86, %v2414
  %2487 = vst.msk [vmem:[%s3 + $0xc0] sm:$0xff] %vm86, %v2415
  %2488 = vst.msk [vmem:[%s3 + $0xc8] sm:$0xff] %vm86, %v2416
  %2489 = vst.msk [vmem:[%s3 + $0xd0] sm:$0xff] %vm86, %v2417
  %2490 = vst.msk [vmem:[%s3 + $0xd8] sm:$0xff] %vm86, %v2418
  %2491 = vst.msk [vmem:[%s3 + $0xe0] sm:$0xff] %vm86, %v2419
  %2492 = vst.msk [vmem:[%s3 + $0xe8] sm:$0xff] %vm86, %v2420
  %2493 = vst.msk [vmem:[%s3 + $0xf0] sm:$0xff] %vm86, %v2421
  %2494 = vst.msk [vmem:[%s3 + $0xf8] sm:$0xff] %vm86, %v2422
  %2495 = vst.msk [vmem:[%s3 + $0x100] sm:$0xff] %vm86, %v2423
  %2496 = vst.msk [vmem:[%s3 + $0x108] sm:$0xff] %vm86, %v2424
  %2497 = vst.msk [vmem:[%s3 + $0x110] sm:$0xff] %vm86, %v2425
  %2498 = vst.msk [vmem:[%s3 + $0x118] sm:$0xff] %vm86, %v2426
  %2499 = vst.msk [vmem:[%s3 + $0x120] sm:$0xff] %vm86, %v2427
  %2500 = vst.msk [vmem:[%s3 + $0x128] sm:$0xff] %vm86, %v2428
  %2501 = vst.msk [vmem:[%s3 + $0x130] sm:$0xff] %vm86, %v2429
  %2502 = vst.msk [vmem:[%s3 + $0x138] sm:$0xff] %vm86, %v2430
  %2503 = vst.msk [vmem:[%s3 + $0x140] sm:$0xff] %vm86, %v2431
  %2504 = vst.msk [vmem:[%s3 + $0x148] sm:$0xff] %vm86, %v2432
  %2505 = vst.msk [vmem:[%s3 + $0x150] sm:$0xff] %vm86, %v2433
  %2506 = vst.msk [vmem:[%s3 + $0x158] sm:$0xff] %vm86, %v2434
  %2507 = vst.msk [vmem:[%s3 + $0x160] sm:$0xff] %vm86, %v2435
  %2508 = vst.msk [vmem:[%s3 + $0x168] sm:$0xff] %vm86, %v2436
  %2509 = vst.msk [vmem:[%s3 + $0x170] sm:$0xff] %vm86, %v2437
  %2510 = vst.msk [vmem:[%s3 + $0x178] sm:$0xff] %vm86, %v2438
  %2511 = vst.msk [vmem:[%s3 + $0x180] sm:$0xff] %vm86, %v2439
  %2512 = vst.msk [vmem:[%s3 + $0x188] sm:$0xff] %vm86, %v2440
  %2513 = vst.msk [vmem:[%s3 + $0x190] sm:$0xff] %vm86, %v2441
  %2514 = vst.msk [vmem:[%s3 + $0x198] sm:$0xff] %vm86, %v2442
  %2515 = vst.msk [vmem:[%s3 + $0x1a0] sm:$0xff] %vm86, %v2443
  %2516 = vst.msk [vmem:[%s3 + $0x1a8] sm:$0xff] %vm86, %v2444
  %2517 = vst.msk [vmem:[%s3 + $0x1b0] sm:$0xff] %vm86, %v2445
  %2518 = vst.msk [vmem:[%s3 + $0x1b8] sm:$0xff] %vm86, %v2446
  %2519 = vst.msk [vmem:[%s3 + $0x1c0] sm:$0xff] %vm86, %v2447
  %2520 = vst.msk [vmem:[%s3 + $0x1c8] sm:$0xff] %vm86, %v2448
  %2521 = vst.msk [vmem:[%s3 + $0x1d0] sm:$0xff] %vm86, %v2449
  %2522 = vst.msk [vmem:[%s3 + $0x1d8] sm:$0xff] %vm86, %v2450
  %2523 = vst.msk [vmem:[%s3 + $0x1e0] sm:$0xff] %vm86, %v2451
  %2524 = vst.msk [vmem:[%s3 + $0x1e8] sm:$0xff] %vm86, %v2452
  %2525 = vst.msk [vmem:[%s3 + $0x1f0] sm:$0xff] %vm86, %v2453
  %2526 = vst.msk [vmem:[%s3 + $0x1f8] sm:$0xff] %vm86, %v2454
  %2527 = vst.msk [vmem:[%s3 + $0x200] sm:$0xff] %vm86, %v2455
  %2528 = vst.msk [vmem:[%s3 + $0x208] sm:$0xff] %vm86, %v2456
  %2529 = vst.msk [vmem:[%s3 + $0x210] sm:$0xff] %vm86, %v2457
  %2530 = vst.msk [vmem:[%s3 + $0x218] sm:$0xff] %vm86, %v2458
  %2531 = vst.msk [vmem:[%s3 + $0x220] sm:$0xff] %vm86, %v2459
  %2532 = vst.msk [vmem:[%s3 + $0x228] sm:$0xff] %vm86, %v2460
  %2533 = vst.msk [vmem:[%s3 + $0x230] sm:$0xff] %vm86, %v2461
  %2534 = vst.msk [vmem:[%s3 + $0x238] sm:$0xff] %vm86, %v2462
  // Predicated region
  $region14: #{tpu_custom_call.1} parent=0 // pred_check
    _
  $region15: #{tpu_custom_call.1} parent=0 // pred_check_branch
    %2536 = sbr.rel (0) target = $region17
  $region16: #{tpu_custom_call.1} parent=0 // pred_region
    _
  $region17: #{tpu_custom_call.1} parent=0 // pred_fallthru
    _
  // Predicated region
  $region18: #{tpu_custom_call.1} parent=0 // pred_check
    _
  $region19: #{tpu_custom_call.1} parent=0 // pred_check_branch
    %2538 = sbr.rel (0) target = $region21
  $region20: #{tpu_custom_call.1} parent=0 // pred_region
    _
  $region21: #{tpu_custom_call.1} parent=0 // pred_fallthru
    _

</llo_original>
